<compile_context>
chip_gen: v6e
topology: v6e:2x2x1
jax: 0.10.0
libtpu: 0.0.40
codegen_flags: <defaults>
</compile_context>

<pallas_src>
import functools

import jax
import jax.numpy as jnp
from jax.experimental import pallas as pl
from jax.experimental.pallas import tpu as pltpu


# ----------------------------------------------------------------------------
# Synthetic model configuration (small shapes standing in for the real ones)
# ----------------------------------------------------------------------------
B = 2          # batch
IMG = 16       # image side (224 in the real model)
V = 64         # full mesh vertices (6890)
VS = 16        # sub-sampled mesh vertices (431)
K_TOK = 16     # local feature tokens (spatial positions of local_features[-1])
C_LOC = 16     # local feature channels
C_ATT = 16     # attended feature channels produced by PoseNet
F_G = 32       # global feature dim (2048)
F_ENC = 32     # encoded global feature dim (1024)
C_GRAPH = 32   # GraphCNN_431 num_channels (256 real -- already 256-aligned for v6e/v7x)
N_LAYERS = 2   # GraphCNN_431 num_layers
N_ROT = 24     # SMPL body joints
N_BETA = 10    # SMPL shape coefficients

# fused global-feature head column layout: [shape | pose | graph_img_bias | cam | pad]
# (blend input [shape|pose] lives at lane offset 0 so the in-kernel slice is aligned)
_N_BLEND = N_BETA + N_ROT * 9
_H_SHP0, _H_SHP1 = 0, N_BETA
_H_POSE0, _H_POSE1 = _H_SHP1, _H_SHP1 + N_ROT * 9
_H_GB0, _H_GB1 = _H_POSE1, _H_POSE1 + C_GRAPH
_H_CAM0, _H_CAM1 = _H_GB1, _H_GB1 + 3
_H_TOTAL = _H_CAM1
_H_PAD = ((_H_TOTAL + 127) // 128) * 128           # lane-dense padded head width
_VP3 = ((V * 3 + 127) // 128) * 128                # lane-padded V*3 for the blend output
_TN_BLEND = 128        # blend N-tile (use 512-2048 / 256-multiples at real V=6890 sizes)
_VMEM_LIMIT = 64 * 1024 * 1024

# MXU operand dtype.  TODO(synk): per-generation weight quantization for the
# HBM-bound blend_dirs / mesh operators (int8 on v5e/v6e, fp8 on v7x).
MXU_DTYPE = jnp.bfloat16

# Single-buffer grid-invariant weight blocks (their index_map is constant, so
# double-buffering only wastes VMEM -- important on v7x's 64 MiB).  Flipped to
# False at runtime if this jax build rejects pl.Buffered(1).
_SINGLE_BUFFER_INVARIANTS = [True]


def _invariant_spec(shape, index_map):
    if _SINGLE_BUFFER_INVARIANTS[0]:
        return pl.BlockSpec(shape, index_map, pipeline_mode=pl.Buffered(1))
    return pl.BlockSpec(shape, index_map)


def _mxu_dot(a, b):
    """MXU matmul: bf16 operands (weights arrive pre-cast), f32 accumulation."""
    return jnp.dot(a.astype(MXU_DTYPE), b.astype(MXU_DTYPE),
                   preferred_element_type=jnp.float32)


# ----------------------------------------------------------------------------
# Kernel 1: fused [HMR heads | gcn_feature->graph bias] matmul + SMPL blendshapes
# ----------------------------------------------------------------------------
def _heads_blend_kernel(g_ref, wh_ref, bh_ref, bd_ref, tpl_ref,
                        heads_ref, vflat_ref, hscr_ref):
    # heads are computed once (grid step 0) and kept resident in VMEM scratch;
    # the blendshape weight stream is N-tiled and double-buffered across the grid.
    @pl.when(pl.program_id(0) == 0)
    def _():
        h = _mxu_dot(g_ref[...], wh_ref[...]) + bh_ref[...]
        hscr_ref[...] = h
        heads_ref[...] = h

    blend_in = hscr_ref[:, _H_SHP0:_H_POSE1]            # (B, 226) = [shape | vec(R-I)]
    vflat_ref[...] = _mxu_dot(blend_in, bd_ref[...]) + tpl_ref[...]


def heads_blend(global_feature, p):
    Bb, Fg = global_feature.shape
    Hp = p["W_heads"].shape[1]
    Vp3 = p["blend_dirs"].shape[1]
    tn = _TN_BLEND
    return pl.pallas_call(
        _heads_blend_kernel,
        out_shape=(jax.ShapeDtypeStruct((Bb, Hp), jnp.float32),
                   jax.ShapeDtypeStruct((Bb, Vp3), jnp.float32)),
        grid=(Vp3 // tn,),
        in_specs=[
            _invariant_spec((Bb, Fg), lambda n: (0, 0)),
            _invariant_spec((Fg, Hp), lambda n: (0, 0)),
            _invariant_spec((1, Hp), lambda n: (0, 0)),
            pl.BlockSpec((_N_BLEND, tn), lambda n: (0, n)),   # streamed weight tile
            pl.BlockSpec((1, tn), lambda n: (0, n)),          # streamed template tile
        ],
        out_specs=(pl.BlockSpec((Bb, Hp), lambda n: (0, 0)),
                   pl.BlockSpec((Bb, tn), lambda n: (0, n))),
        scratch_shapes=[pltpu.VMEM((Bb, Hp), jnp.float32)],
        compiler_params=pltpu.CompilerParams(
            dimension_semantics=("arbitrary",),       # step 0 produces the resident heads
            vmem_limit_bytes=_VMEM_LIMIT),
    )(global_feature, p["W_heads"], p["b_heads"],
      p["blend_dirs"], p["smpl_template_flat"])


# ----------------------------------------------------------------------------
# Kernel 2: fused per-batch GraphCNN_431 branch (channels-first, lane-dense out)
# ----------------------------------------------------------------------------
def _cmr_graph_kernel(verts_ref, gbias_ref, lfeat_ref,
                      dT_ref, uT_ref, w431T_ref, aT_ref,
                      wvT_ref, waT_ref, binT_ref,
                      gwT_ref, gbT_ref, wshapeT_ref, wcamT_ref, bcamT_ref,
                      out_ref, *, num_layers):
    """downsample -> split-weight input conv -> N graph convs -> shape head ->
    upsample (+ mean-pool camera head), all channels-first so every matmul and
    the output store are lane-dense.  Everything stays resident in VMEM."""
    vv = uT_ref.shape[1]
    v_t = verts_ref[0]                                   # (3, V)   SMPL vertices^T
    vs_t = _mxu_dot(v_t, dT_ref[...])                    # (3, VS)  mesh.downsample^T
    att_t = _mxu_dot(lfeat_ref[0], w431T_ref[...])       # (C_ATT, VS) = (W431 @ lfeat)^T
    # first graph conv with row-split weights; the (F_ENC, VS) broadcast / concat of
    # image_encode_431 is never materialized -- its contribution is the per-batch
    # column gbias_ref (folded into the upstream fused head matmul).
    hw_t = (_mxu_dot(wvT_ref[...], vs_t)
            + _mxu_dot(waT_ref[...], att_t)
            + gbias_ref[0])                              # (C, VS) + (C, 1) bcast
    h_t = jnp.maximum(_mxu_dot(hw_t, aT_ref[...]) + binT_ref[...], 0.0)
    # TODO(synk): at real size (431x256 activations) switch to
    # lax.fori_loop(..., unroll=True) with dynamic gwT_ref[l] if spills show up.
    for l in range(num_layers):
        hw_t = _mxu_dot(gwT_ref[l], h_t)
        h_t = jnp.maximum(_mxu_dot(hw_t, aT_ref[...]) + gbT_ref[l], 0.0)
    # per-vertex shape head + mesh.upsample, lane-dense (3, V)
    pred_sub_t = _mxu_dot(wshapeT_ref[...], h_t)         # (3, VS)
    verts_out = _mxu_dot(pred_sub_t, uT_ref[...])        # (3, V)
    # camera head from mean-pooled graph features (f32 epilogue)
    pooled_t = jnp.sum(h_t, axis=1, keepdims=True) * (1.0 / h_t.shape[1])   # (C, 1)
    cam_t = _mxu_dot(wcamT_ref[...], pooled_t) + bcamT_ref[...]             # (3, 1)
    # one lane-dense bulk store + camera packed into the trailing lane column
    out_ref[0, :, :vv] = verts_out
    out_ref[0, :, vv:vv + 1] = cam_t


def cmr_graph(verts_t, graph_img_bias, lfeat_t, p):
    """verts_t: (B,3,V), graph_img_bias: (B,C,1), lfeat_t: (B,C_ATT,K).
    Returns packed (B, 3, V+1): [:, :, :V] = pred vertices^T, [:, :, V] = camera."""
    Bb, _, Vv = verts_t.shape
    Catt, Kt = lfeat_t.shape[1], lfeat_t.shape[2]
    Vs = p["mesh_U_T"].shape[0]
    C = p["g_in_b_T"].shape[0]
    nl = p["g_w_T"].shape[0]

    def wspec(shape):
        nd = len(shape)
        return _invariant_spec(shape, lambda b, _n=nd: (0,) * _n)

    # TODO(synk): on v7x (2 TCs) add a V-tile "parallel" grid axis for the
    # upsample/writeback when B is 1 or odd; neutral on v5e/v6e.
    return pl.pallas_call(
        functools.partial(_cmr_graph_kernel, num_layers=nl),
        out_shape=jax.ShapeDtypeStruct((Bb, 3, Vv + 1), jnp.float32),
        grid=(Bb,),
        in_specs=[
            pl.BlockSpec((1, 3, Vv), lambda b: (b, 0, 0)),
            pl.BlockSpec((1, C, 1), lambda b: (b, 0, 0)),
            pl.BlockSpec((1, Catt, Kt), lambda b: (b, 0, 0)),
            wspec((Vv, Vs)), wspec((Vs, Vv)), wspec((Kt, Vs)), wspec((Vs, Vs)),
            wspec((C, 3)), wspec((C, Catt)), wspec((C, 1)),
            wspec((nl, C, C)), wspec((nl, C, 1)),
            wspec((3, C)), wspec((3, C)), wspec((3, 1)),
        ],
        out_specs=pl.BlockSpec((1, 3, Vv + 1), lambda b: (b, 0, 0)),
        compiler_params=pltpu.CompilerParams(
            dimension_semantics=("parallel",),
            vmem_limit_bytes=_VMEM_LIMIT),
    )(verts_t, graph_img_bias, lfeat_t,
      p["mesh_D_T"], p["mesh_U_T"], p["W_431_T"], p["A_T"],
      p["g_in_w_vert_T"], p["g_in_w_att_T"], p["g_in_b_T"],
      p["g_w_T"], p["g_b_T"], p["g_shape_w_T"], p["g_cam_w_T"], p["g_cam_b_T"])


# ----------------------------------------------------------------------------
# Synthetic parameters (deterministic; fused / pre-folded / pre-transposed /
# pre-cast to bf16 where possible so kernels never convert weights)
# ----------------------------------------------------------------------------
def make_params():
    keys = jax.random.split(jax.random.PRNGKey(1), 32)
    k = iter(keys)
    s = 0.05
    p = {}
    # backbone stub (XLA side). TODO(synk): resnet50 conv stack has no Pallas port here.
    p["bb_w"] = s * jax.random.normal(next(k), (3, F_G))
    p["bb_b"] = jnp.zeros((1, F_G))
    loc_w = s * jax.random.normal(next(k), (3, C_LOC))        # 1x1 conv on pooled map
    loc_b = jnp.zeros((1, C_LOC))
    pn_w = s * jax.random.normal(next(k), (C_LOC, C_ATT))     # PoseNet projection stub
    pn_b = jnp.zeros((1, C_ATT))
    # fold local conv + posenet projection (both affine, no nonlinearity between)
    p["W_locpn"] = loc_w @ pn_w
    p["b_locpn"] = loc_b @ pn_w + pn_b
    # GraphCNN_431 first-layer weight, row-split [vert | img | att]
    c_in = 3 + F_ENC + C_GRAPH * 0 + C_ATT
    g_in_w = s * jax.random.normal(next(k), (3 + F_ENC + C_ATT, C_GRAPH))
    del c_in
    g_in_w_vert = g_in_w[:3]
    g_in_w_img = g_in_w[3:3 + F_ENC]
    g_in_w_att = g_in_w[3 + F_ENC:]
    p["g_in_w_vert_T"] = g_in_w_vert.T.astype(MXU_DTYPE)       # (C, 3)
    p["g_in_w_att_T"] = g_in_w_att.T.astype(MXU_DTYPE)         # (C, C_ATT)
    p["g_in_b_T"] = jnp.zeros((C_GRAPH, 1))
    # gcn_feature encoder (folded into the head matmul below)
    enc_w = s * jax.random.normal(next(k), (F_G, F_ENC))
    enc_b = jnp.zeros((1, F_ENC))
    # HMR heads. TODO(synk): iterative regression + smpl_mean_params + rot6d->rotmat omitted.
    hmr_pose_w = s * jax.random.normal(next(k), (F_G, N_ROT * 9))
    hmr_shape_w = s * jax.random.normal(next(k), (F_G, N_BETA))
    hmr_cam_w = s * jax.random.normal(next(k), (F_G, 3))
    # fold gcn_feature -> graph-input-bias into the same matmul (f32 fold, bf16 store)
    fold_img_w = enc_w @ g_in_w_img                             # (F_G, C_GRAPH)
    fold_img_b = enc_b @ g_in_w_img                             # (1, C_GRAPH)
    w_cat = jnp.concatenate([hmr_shape_w, hmr_pose_w, fold_img_w, hmr_cam_w], axis=1)
    b_cat = jnp.concatenate([jnp.zeros((1, N_BETA)), jnp.zeros((1, N_ROT * 9)),
                             fold_img_b, jnp.zeros((1, 3))], axis=1)
    p["W_heads"] = jnp.pad(w_cat, ((0, 0), (0, _H_PAD - _H_TOTAL))).astype(MXU_DTYPE)
    p["b_heads"] = jnp.pad(b_cat, ((0, 0), (0, _H_PAD - _H_TOTAL)))
    # SMPL stub. TODO(synk): linear blend skinning replaced by blendshape matmuls.
    template = jax.random.normal(next(k), (V, 3))
    shapedirs = s * jax.random.normal(next(k), (N_BETA, V * 3))
    posedirs = 0.01 * jax.random.normal(next(k), (N_ROT * 9, V * 3))
    blend = jnp.concatenate([shapedirs, posedirs], axis=0)      # (226, V*3)
    p["blend_dirs"] = jnp.pad(blend, ((0, 0), (0, _VP3 - V * 3))).astype(MXU_DTYPE)
    p["smpl_template_flat"] = jnp.pad(template.reshape(1, V * 3),
                                      ((0, 0), (0, _VP3 - V * 3)))
    # mesh down / up sampling operators (synthetic); stored transposed + bf16
    group = V // VS
    D = jnp.zeros((VS, V)).at[jnp.repeat(jnp.arange(VS), group),
                              jnp.arange(V)].set(1.0 / group)
    U = jnp.zeros((V, VS)).at[jnp.arange(V),
                              jnp.repeat(jnp.arange(VS), group)].set(1.0)
    p["mesh_D_T"] = D.T.astype(MXU_DTYPE)                       # (V, VS)
    p["mesh_U_T"] = U.T.astype(MXU_DTYPE)                       # (VS, V)
    # graph_431 attention matrix W_431_neutral (stored transposed)
    W_431 = s * jax.random.normal(next(k), (VS, K_TOK))
    p["W_431_T"] = W_431.T.astype(MXU_DTYPE)                    # (K, VS)
    # graph adjacency (mesh._A analog): normalized ring + self loops
    A = jnp.eye(VS) + jnp.roll(jnp.eye(VS), 1, axis=1) + jnp.roll(jnp.eye(VS), -1, axis=1)
    A = A / jnp.sum(A, axis=1, keepdims=True)
    p["A_T"] = A.T.astype(MXU_DTYPE)
    p["g_w_T"] = jnp.stack([(s * jax.random.normal(next(k), (C_GRAPH, C_GRAPH))).T
                            for _ in range(N_LAYERS)]).astype(MXU_DTYPE)
    p["g_b_T"] = jnp.zeros((N_LAYERS, C_GRAPH, 1))
    p["g_shape_w_T"] = (s * jax.random.normal(next(k), (C_GRAPH, 3))).T.astype(MXU_DTYPE)
    p["g_cam_w_T"] = (s * jax.random.normal(next(k), (C_GRAPH, 3))).T.astype(MXU_DTYPE)
    p["g_cam_b_T"] = jnp.zeros((3, 1))
    return p


# ----------------------------------------------------------------------------
# CMR forward (structure mirrors the PyTorch module's forward())
# ----------------------------------------------------------------------------
def cmr_forward(p, image):
    batch = image.shape[0]

    # ---- backbone(image) -> global_feature, local_features[-1] ---------------
    # TODO(synk): resnet50 stem/stages replaced by pooling + affine stubs (XLA).
    gpool = jnp.mean(image, axis=(2, 3))                                   # (B, 3)
    global_feature = gpool @ p["bb_w"] + p["bb_b"]                         # (B, F_G)
    lpool = jnp.mean(image.reshape(batch, 3, 4, IMG // 4, 4, IMG // 4),
                     axis=(3, 5))                                          # (B, 3, 4, 4)
    loc_tokens = lpool.reshape(batch, 3, K_TOK).transpose(0, 2, 1)         # (B, K, 3)

    # ---- posenet(local_features[-1]) -> local_feature (folded affine, XLA stub)
    # TODO(synk): PoseNet deconv / heatmap branch (pose_feature) unused downstream.
    local_feature = loc_tokens @ p["W_locpn"] + p["b_locpn"]               # (B, K, C_ATT)
    lfeat_t = jnp.transpose(local_feature, (0, 2, 1))                      # (B, C_ATT, K)

    # ---- gcn_feature + HMR heads + SMPL blendshapes: one fused Pallas kernel --
    heads, vflat = heads_blend(global_feature, p)
    shape_hmr = heads[:, _H_SHP0:_H_SHP1]                                  # (B, 10)
    pose_flat = heads[:, _H_POSE0:_H_POSE1]                                # (B, 216)
    graph_img_bias = heads[:, _H_GB0:_H_GB1]                               # (B, C_GRAPH)
    cam_hmr = heads[:, _H_CAM0:_H_CAM1]                                    # (B, 3)
    # TODO(synk): rot6d->rotmat / orthonormalization of the HMR pose omitted (stub).
    rotmat_hmr = pose_flat.reshape(batch, N_ROT, 3, 3) + jnp.eye(3)        # (B, 24, 3, 3)
    vertices_hmr = vflat[:, :V * 3].reshape(batch, V, 3)                   # (B, V, 3)

    # ---- downsample + graph_431 + shape/cam heads + upsample: one kernel ------
    verts_t = jnp.transpose(vertices_hmr, (0, 2, 1))                       # (B, 3, V)
    packed = cmr_graph(verts_t, graph_img_bias[:, :, None], lfeat_t, p)    # (B, 3, V+1)
    pred_vertices_431 = jnp.transpose(packed[:, :, :V], (0, 2, 1))         # (B, V, 3)
    pred_camera_431 = packed[:, :, V]                                      # (B, 3)

    # TODO(synk): smpl.get_train_joints keypoints are dead in the torch return; dropped.
    return (pred_vertices_431, vertices_hmr, cam_hmr, pred_camera_431,
            rotmat_hmr, shape_hmr)


if __name__ == "__main__":
    image = jax.random.normal(jax.random.PRNGKey(0), (B, 3, IMG, IMG), jnp.float32)
    params = make_params()

    def _run():
        return jax.block_until_ready(jax.jit(cmr_forward)(params, image))

    try:
        outs = _run()
    except Exception:
        # TODO(synk): this jax build rejected pl.Buffered(1) single-buffering of
        # grid-invariant weight blocks; fall back to default double buffering.
        _SINGLE_BUFFER_INVARIANTS[0] = False
        outs = _run()

    expected = [(B, V, 3), (B, V, 3), (B, 3), (B, 3), (B, N_ROT, 3, 3), (B, N_BETA)]
    assert [tuple(o.shape) for o in outs] == expected, [o.shape for o in outs]
    assert all(bool(jnp.all(jnp.isfinite(o))) for o in outs)
    print("KERNEL_OK")
</pallas_src>

<mosaic_0001>
module attributes {stable_mosaic.version = 11 : i64} {
  func.func @_heads_blend_kernel(%arg0: i32, %arg1: memref<2x32xf32, #tpu.memory_space<vmem>>, %arg2: memref<32x384xbf16, #tpu.memory_space<vmem>>, %arg3: memref<1x384xf32, #tpu.memory_space<vmem>>, %arg4: memref<226x128xbf16, #tpu.memory_space<vmem>>, %arg5: memref<1x128xf32, #tpu.memory_space<vmem>>, %arg6: memref<2x384xf32, #tpu.memory_space<vmem>>, %arg7: memref<2x128xf32, #tpu.memory_space<vmem>>, %arg8: memref<2x384xf32, #tpu.memory_space<vmem>>) attributes {dimension_semantics = [#tpu.dimension_semantics<arbitrary>], iteration_bounds = array<i64: 2>, scalar_prefetch = 0 : i64, scratch_operands = 1 : i64, tpu.core_type = #tpu.core_type<tc>, window_params = [{pipeline_mode = #tpu.pipeline_mode<synchronous>, transform_indices = @transform_0, window_bounds = array<i64: 2, 32>}, {pipeline_mode = #tpu.pipeline_mode<synchronous>, transform_indices = @transform_1, window_bounds = array<i64: 32, 384>}, {pipeline_mode = #tpu.pipeline_mode<synchronous>, transform_indices = @transform_2, window_bounds = array<i64: 1, 384>}, {transform_indices = @transform_3, window_bounds = array<i64: 226, 128>}, {transform_indices = @transform_4, window_bounds = array<i64: 1, 128>}, {pipeline_mode = #tpu.pipeline_mode<synchronous>, transform_indices = @transform_5, window_bounds = array<i64: 2, 384>}, {transform_indices = @transform_6, window_bounds = array<i64: 2, 128>}]} {
    %c0_i32 = arith.constant 0 : i32
    %0 = arith.cmpi eq, %arg0, %c0_i32 : i32
    %1 = arith.extui %0 : i1 to i32
    %c0_i32_0 = arith.constant 0 : i32
    %2 = arith.cmpi ne, %1, %c0_i32_0 : i32
    scf.if %2 {
      %c0_8 = arith.constant 0 : index
      %c0_9 = arith.constant 0 : index
      %11 = vector.load %arg1[%c0_8, %c0_9] : memref<2x32xf32, #tpu.memory_space<vmem>>, vector<2x32xf32>
      %c0_10 = arith.constant 0 : index
      %c0_11 = arith.constant 0 : index
      %12 = vector.load %arg2[%c0_10, %c0_11] : memref<32x384xbf16, #tpu.memory_space<vmem>>, vector<32x384xbf16>
      %13 = arith.truncf %11 : vector<2x32xf32> to vector<2x32xbf16>
      %cst_12 = arith.constant dense<0.000000e+00> : vector<2x384xf32>
      %14 = tpu.matmul %13, %12, %cst_12 {dimension_numbers = #tpu.dot_dimension_numbers<[1], [0], [0], [1], [0, 0, 1, 1], [], []>} : vector<2x32xbf16>, vector<32x384xbf16>, vector<2x384xf32> -> vector<2x384xf32>
      %c0_13 = arith.constant 0 : index
      %c0_14 = arith.constant 0 : index
      %15 = vector.load %arg3[%c0_13, %c0_14] : memref<1x384xf32, #tpu.memory_space<vmem>>, vector<1x384xf32>
      %16 = vector.broadcast %15 : vector<1x384xf32> to vector<2x384xf32>
      %17 = arith.addf %14, %16 : vector<2x384xf32>
      %c0_15 = arith.constant 0 : index
      %c0_16 = arith.constant 0 : index
      %18 = vector.load %arg8[%c0_15, %c0_16] : memref<2x384xf32, #tpu.memory_space<vmem>>, vector<2x384xf32>
      tpu.vector_store %arg8[%c0_15, %c0_16], %17 {strides = array<i32>} : memref<2x384xf32, #tpu.memory_space<vmem>>, vector<2x384xf32>,
      %c0_17 = arith.constant 0 : index
      %c0_18 = arith.constant 0 : index
      %19 = vector.load %arg6[%c0_17, %c0_18] : memref<2x384xf32, #tpu.memory_space<vmem>>, vector<2x384xf32>
      tpu.vector_store %arg6[%c0_17, %c0_18], %17 {strides = array<i32>} : memref<2x384xf32, #tpu.memory_space<vmem>>, vector<2x384xf32>,
    } else {
    }
    %c0 = arith.constant 0 : index
    %c0_1 = arith.constant 0 : index
    %3 = vector.load %arg8[%c0, %c0_1] : memref<2x384xf32, #tpu.memory_space<vmem>>, vector<2x226xf32>
    %c0_2 = arith.constant 0 : index
    %c0_3 = arith.constant 0 : index
    %4 = vector.load %arg4[%c0_2, %c0_3] : memref<226x128xbf16, #tpu.memory_space<vmem>>, vector<226x128xbf16>
    %5 = arith.truncf %3 : vector<2x226xf32> to vector<2x226xbf16>
    %cst = arith.constant dense<0.000000e+00> : vector<2x128xf32>
    %6 = tpu.matmul %5, %4, %cst {dimension_numbers = #tpu.dot_dimension_numbers<[1], [0], [0], [1], [0, 0, 1, 1], [], []>} : vector<2x226xbf16>, vector<226x128xbf16>, vector<2x128xf32> -> vector<2x128xf32>
    %c0_4 = arith.constant 0 : index
    %c0_5 = arith.constant 0 : index
    %7 = vector.load %arg5[%c0_4, %c0_5] : memref<1x128xf32, #tpu.memory_space<vmem>>, vector<1x128xf32>
    %8 = vector.broadcast %7 : vector<1x128xf32> to vector<2x128xf32>
    %9 = arith.addf %6, %8 : vector<2x128xf32>
    %c0_6 = arith.constant 0 : index
    %c0_7 = arith.constant 0 : index
    %10 = vector.load %arg7[%c0_6, %c0_7] : memref<2x128xf32, #tpu.memory_space<vmem>>, vector<2x128xf32>
    tpu.vector_store %arg7[%c0_6, %c0_7], %9 {strides = array<i32>} : memref<2x128xf32, #tpu.memory_space<vmem>>, vector<2x128xf32>,
    return
  }
  func.func @transform_0(%arg0: i32) -> (i32, i32) {
    %c0_i32 = arith.constant 0 : i32
    %c0_i32_0 = arith.constant 0 : i32
    %c0_i32_1 = arith.constant 0 : i32
    return %c0_i32, %c0_i32_0 : i32, i32
  }
  func.func @transform_1(%arg0: i32) -> (i32, i32) {
    %c0_i32 = arith.constant 0 : i32
    %c0_i32_0 = arith.constant 0 : i32
    %c0_i32_1 = arith.constant 0 : i32
    return %c0_i32, %c0_i32_0 : i32, i32
  }
  func.func @transform_2(%arg0: i32) -> (i32, i32) {
    %c0_i32 = arith.constant 0 : i32
    %c0_i32_0 = arith.constant 0 : i32
    %c0_i32_1 = arith.constant 0 : i32
    return %c0_i32, %c0_i32_0 : i32, i32
  }
  func.func @transform_3(%arg0: i32) -> (i32, i32) {
    %c0_i32 = arith.constant 0 : i32
    %c0_i32_0 = arith.constant 0 : i32
    return %c0_i32, %arg0 : i32, i32
  }
  func.func @transform_4(%arg0: i32) -> (i32, i32) {
    %c0_i32 = arith.constant 0 : i32
    %c0_i32_0 = arith.constant 0 : i32
    return %c0_i32, %arg0 : i32, i32
  }
  func.func @transform_5(%arg0: i32) -> (i32, i32) {
    %c0_i32 = arith.constant 0 : i32
    %c0_i32_0 = arith.constant 0 : i32
    %c0_i32_1 = arith.constant 0 : i32
    return %c0_i32, %c0_i32_0 : i32, i32
  }
  func.func @transform_6(%arg0: i32) -> (i32, i32) {
    %c0_i32 = arith.constant 0 : i32
    %c0_i32_0 = arith.constant 0 : i32
    return %c0_i32, %arg0 : i32, i32
  }
}

module attributes {stable_mosaic.version = 11 : i64} {
  func.func @_cmr_graph_kernel(%arg0: i32, %arg1: memref<1x3x64xf32, #tpu.memory_space<vmem>>, %arg2: memref<1x32x1xf32, #tpu.memory_space<vmem>>, %arg3: memref<1x16x16xf32, #tpu.memory_space<vmem>>, %arg4: memref<64x16xbf16, #tpu.memory_space<vmem>>, %arg5: memref<16x64xbf16, #tpu.memory_space<vmem>>, %arg6: memref<16x16xbf16, #tpu.memory_space<vmem>>, %arg7: memref<16x16xbf16, #tpu.memory_space<vmem>>, %arg8: memref<32x3xbf16, #tpu.memory_space<vmem>>, %arg9: memref<32x16xbf16, #tpu.memory_space<vmem>>, %arg10: memref<32x1xf32, #tpu.memory_space<vmem>>, %arg11: memref<2x32x32xbf16, #tpu.memory_space<vmem>>, %arg12: memref<2x32x1xf32, #tpu.memory_space<vmem>>, %arg13: memref<3x32xbf16, #tpu.memory_space<vmem>>, %arg14: memref<3x32xbf16, #tpu.memory_space<vmem>>, %arg15: memref<3x1xf32, #tpu.memory_space<vmem>>, %arg16: memref<1x3x65xf32, #tpu.memory_space<vmem>>) attributes {dimension_semantics = [#tpu.dimension_semantics<parallel>], iteration_bounds = array<i64: 2>, scalar_prefetch = 0 : i64, scratch_operands = 0 : i64, tpu.core_type = #tpu.core_type<tc>, window_params = [{transform_indices = @transform_0, window_bounds = array<i64: 1, 3, 64>}, {transform_indices = @transform_1, window_bounds = array<i64: 1, 32, 1>}, {transform_indices = @transform_2, window_bounds = array<i64: 1, 16, 16>}, {pipeline_mode = #tpu.pipeline_mode<synchronous>, transform_indices = @transform_3, window_bounds = array<i64: 64, 16>}, {pipeline_mode = #tpu.pipeline_mode<synchronous>, transform_indices = @transform_4, window_bounds = array<i64: 16, 64>}, {pipeline_mode = #tpu.pipeline_mode<synchronous>, transform_indices = @transform_5, window_bounds = array<i64: 16, 16>}, {pipeline_mode = #tpu.pipeline_mode<synchronous>, transform_indices = @transform_6, window_bounds = array<i64: 16, 16>}, {pipeline_mode = #tpu.pipeline_mode<synchronous>, transform_indices = @transform_7, window_bounds = array<i64: 32, 3>}, {pipeline_mode = #tpu.pipeline_mode<synchronous>, transform_indices = @transform_8, window_bounds = array<i64: 32, 16>}, {pipeline_mode = #tpu.pipeline_mode<synchronous>, transform_indices = @transform_9, window_bounds = array<i64: 32, 1>}, {pipeline_mode = #tpu.pipeline_mode<synchronous>, transform_indices = @transform_10, window_bounds = array<i64: 2, 32, 32>}, {pipeline_mode = #tpu.pipeline_mode<synchronous>, transform_indices = @transform_11, window_bounds = array<i64: 2, 32, 1>}, {pipeline_mode = #tpu.pipeline_mode<synchronous>, transform_indices = @transform_12, window_bounds = array<i64: 3, 32>}, {pipeline_mode = #tpu.pipeline_mode<synchronous>, transform_indices = @transform_13, window_bounds = array<i64: 3, 32>}, {pipeline_mode = #tpu.pipeline_mode<synchronous>, transform_indices = @transform_14, window_bounds = array<i64: 3, 1>}, {transform_indices = @transform_15, window_bounds = array<i64: 1, 3, 65>}]} {
    %c0 = arith.constant 0 : index
    %c0_0 = arith.constant 0 : index
    %c0_1 = arith.constant 0 : index
    %0 = vector.load %arg1[%c0, %c0_0, %c0_1] : memref<1x3x64xf32, #tpu.memory_space<vmem>>, vector<1x3x64xf32>
    %1 = vector.shape_cast %0 : vector<1x3x64xf32> to vector<3x64xf32>
    %c0_2 = arith.constant 0 : index
    %c0_3 = arith.constant 0 : index
    %2 = vector.load %arg4[%c0_2, %c0_3] : memref<64x16xbf16, #tpu.memory_space<vmem>>, vector<64x16xbf16>
    %3 = arith.truncf %1 : vector<3x64xf32> to vector<3x64xbf16>
    %cst = arith.constant dense<0.000000e+00> : vector<3x16xf32>
    %4 = tpu.matmul %3, %2, %cst {dimension_numbers = #tpu.dot_dimension_numbers<[1], [0], [0], [1], [0, 0, 1, 1], [], []>} : vector<3x64xbf16>, vector<64x16xbf16>, vector<3x16xf32> -> vector<3x16xf32>
    %c0_4 = arith.constant 0 : index
    %c0_5 = arith.constant 0 : index
    %c0_6 = arith.constant 0 : index
    %5 = vector.load %arg3[%c0_4, %c0_5, %c0_6] : memref<1x16x16xf32, #tpu.memory_space<vmem>>, vector<1x16x16xf32>
    %6 = vector.shape_cast %5 : vector<1x16x16xf32> to vector<16x16xf32>
    %c0_7 = arith.constant 0 : index
    %c0_8 = arith.constant 0 : index
    %7 = vector.load %arg6[%c0_7, %c0_8] : memref<16x16xbf16, #tpu.memory_space<vmem>>, vector<16x16xbf16>
    %8 = arith.truncf %6 : vector<16x16xf32> to vector<16x16xbf16>
    %cst_9 = arith.constant dense<0.000000e+00> : vector<16x16xf32>
    %9 = tpu.matmul %8, %7, %cst_9 {dimension_numbers = #tpu.dot_dimension_numbers<[1], [0], [0], [1], [0, 0, 1, 1], [], []>} : vector<16x16xbf16>, vector<16x16xbf16>, vector<16x16xf32> -> vector<16x16xf32>
    %c0_10 = arith.constant 0 : index
    %c0_11 = arith.constant 0 : index
    %10 = vector.load %arg8[%c0_10, %c0_11] : memref<32x3xbf16, #tpu.memory_space<vmem>>, vector<32x3xbf16>
    %11 = arith.truncf %4 : vector<3x16xf32> to vector<3x16xbf16>
    %cst_12 = arith.constant dense<0.000000e+00> : vector<32x16xf32>
    %12 = tpu.matmul %10, %11, %cst_12 {dimension_numbers = #tpu.dot_dimension_numbers<[1], [0], [0], [1], [0, 0, 1, 1], [], []>} : vector<32x3xbf16>, vector<3x16xbf16>, vector<32x16xf32> -> vector<32x16xf32>
    %c0_13 = arith.constant 0 : index
    %c0_14 = arith.constant 0 : index
    %13 = vector.load %arg9[%c0_13, %c0_14] : memref<32x16xbf16, #tpu.memory_space<vmem>>, vector<32x16xbf16>
    %14 = arith.truncf %9 : vector<16x16xf32> to vector<16x16xbf16>
    %cst_15 = arith.constant dense<0.000000e+00> : vector<32x16xf32>
    %15 = tpu.matmul %13, %14, %cst_15 {dimension_numbers = #tpu.dot_dimension_numbers<[1], [0], [0], [1], [0, 0, 1, 1], [], []>} : vector<32x16xbf16>, vector<16x16xbf16>, vector<32x16xf32> -> vector<32x16xf32>
    %16 = arith.addf %12, %15 : vector<32x16xf32>
    %c0_16 = arith.constant 0 : index
    %c0_17 = arith.constant 0 : index
    %c0_18 = arith.constant 0 : index
    %17 = vector.load %arg2[%c0_16, %c0_17, %c0_18] : memref<1x32x1xf32, #tpu.memory_space<vmem>>, vector<1x32x1xf32>
    %18 = vector.shape_cast %17 : vector<1x32x1xf32> to vector<32x1xf32>
    %19 = vector.broadcast %18 : vector<32x1xf32> to vector<32x16xf32>
    %20 = arith.addf %16, %19 : vector<32x16xf32>
    %c0_19 = arith.constant 0 : index
    %c0_20 = arith.constant 0 : index
    %21 = vector.load %arg7[%c0_19, %c0_20] : memref<16x16xbf16, #tpu.memory_space<vmem>>, vector<16x16xbf16>
    %22 = arith.truncf %20 : vector<32x16xf32> to vector<32x16xbf16>
    %cst_21 = arith.constant dense<0.000000e+00> : vector<32x16xf32>
    %23 = tpu.matmul %22, %21, %cst_21 {dimension_numbers = #tpu.dot_dimension_numbers<[1], [0], [0], [1], [0, 0, 1, 1], [], []>} : vector<32x16xbf16>, vector<16x16xbf16>, vector<32x16xf32> -> vector<32x16xf32>
    %c0_22 = arith.constant 0 : index
    %c0_23 = arith.constant 0 : index
    %24 = vector.load %arg10[%c0_22, %c0_23] : memref<32x1xf32, #tpu.memory_space<vmem>>, vector<32x1xf32>
    %25 = vector.broadcast %24 : vector<32x1xf32> to vector<32x16xf32>
    %26 = arith.addf %23, %25 : vector<32x16xf32>
    %cst_24 = arith.constant 0.000000e+00 : f32
    %27 = vector.broadcast %cst_24 : f32 to vector<32x16xf32>
    %28 = arith.maximumf %26, %27 : vector<32x16xf32>
    %c0_25 = arith.constant 0 : index
    %c0_26 = arith.constant 0 : index
    %c0_27 = arith.constant 0 : index
    %29 = vector.load %arg11[%c0_25, %c0_26, %c0_27] : memref<2x32x32xbf16, #tpu.memory_space<vmem>>, vector<1x32x32xbf16>
    %30 = vector.shape_cast %29 : vector<1x32x32xbf16> to vector<32x32xbf16>
    %31 = arith.truncf %28 : vector<32x16xf32> to vector<32x16xbf16>
    %cst_28 = arith.constant dense<0.000000e+00> : vector<32x16xf32>
    %32 = tpu.matmul %30, %31, %cst_28 {dimension_numbers = #tpu.dot_dimension_numbers<[1], [0], [0], [1], [0, 0, 1, 1], [], []>} : vector<32x32xbf16>, vector<32x16xbf16>, vector<32x16xf32> -> vector<32x16xf32>
    %c0_29 = arith.constant 0 : index
    %c0_30 = arith.constant 0 : index
    %33 = vector.load %arg7[%c0_29, %c0_30] : memref<16x16xbf16, #tpu.memory_space<vmem>>, vector<16x16xbf16>
    %34 = arith.truncf %32 : vector<32x16xf32> to vector<32x16xbf16>
    %cst_31 = arith.constant dense<0.000000e+00> : vector<32x16xf32>
    %35 = tpu.matmul %34, %33, %cst_31 {dimension_numbers = #tpu.dot_dimension_numbers<[1], [0], [0], [1], [0, 0, 1, 1], [], []>} : vector<32x16xbf16>, vector<16x16xbf16>, vector<32x16xf32> -> vector<32x16xf32>
    %c0_32 = arith.constant 0 : index
    %c0_33 = arith.constant 0 : index
    %c0_34 = arith.constant 0 : index
    %36 = vector.load %arg12[%c0_32, %c0_33, %c0_34] : memref<2x32x1xf32, #tpu.memory_space<vmem>>, vector<1x32x1xf32>
    %37 = vector.shape_cast %36 : vector<1x32x1xf32> to vector<32x1xf32>
    %38 = vector.broadcast %37 : vector<32x1xf32> to vector<32x16xf32>
    %39 = arith.addf %35, %38 : vector<32x16xf32>
    %cst_35 = arith.constant 0.000000e+00 : f32
    %40 = vector.broadcast %cst_35 : f32 to vector<32x16xf32>
    %41 = arith.maximumf %39, %40 : vector<32x16xf32>
    %c1 = arith.constant 1 : index
    %c0_36 = arith.constant 0 : index
    %c0_37 = arith.constant 0 : index
    %42 = vector.load %arg11[%c1, %c0_36, %c0_37] : memref<2x32x32xbf16, #tpu.memory_space<vmem>>, vector<1x32x32xbf16>
    %43 = vector.shape_cast %42 : vector<1x32x32xbf16> to vector<32x32xbf16>
    %44 = arith.truncf %41 : vector<32x16xf32> to vector<32x16xbf16>
    %cst_38 = arith.constant dense<0.000000e+00> : vector<32x16xf32>
    %45 = tpu.matmul %43, %44, %cst_38 {dimension_numbers = #tpu.dot_dimension_numbers<[1], [0], [0], [1], [0, 0, 1, 1], [], []>} : vector<32x32xbf16>, vector<32x16xbf16>, vector<32x16xf32> -> vector<32x16xf32>
    %c0_39 = arith.constant 0 : index
    %c0_40 = arith.constant 0 : index
    %46 = vector.load %arg7[%c0_39, %c0_40] : memref<16x16xbf16, #tpu.memory_space<vmem>>, vector<16x16xbf16>
    %47 = arith.truncf %45 : vector<32x16xf32> to vector<32x16xbf16>
    %cst_41 = arith.constant dense<0.000000e+00> : vector<32x16xf32>
    %48 = tpu.matmul %47, %46, %cst_41 {dimension_numbers = #tpu.dot_dimension_numbers<[1], [0], [0], [1], [0, 0, 1, 1], [], []>} : vector<32x16xbf16>, vector<16x16xbf16>, vector<32x16xf32> -> vector<32x16xf32>
    %c1_42 = arith.constant 1 : index
    %c0_43 = arith.constant 0 : index
    %c0_44 = arith.constant 0 : index
    %49 = vector.load %arg12[%c1_42, %c0_43, %c0_44] : memref<2x32x1xf32, #tpu.memory_space<vmem>>, vector<1x32x1xf32>
    %50 = vector.shape_cast %49 : vector<1x32x1xf32> to vector<32x1xf32>
    %51 = vector.broadcast %50 : vector<32x1xf32> to vector<32x16xf32>
    %52 = arith.addf %48, %51 : vector<32x16xf32>
    %cst_45 = arith.constant 0.000000e+00 : f32
    %53 = vector.broadcast %cst_45 : f32 to vector<32x16xf32>
    %54 = arith.maximumf %52, %53 : vector<32x16xf32>
    %c0_46 = arith.constant 0 : index
    %c0_47 = arith.constant 0 : index
    %55 = vector.load %arg13[%c0_46, %c0_47] : memref<3x32xbf16, #tpu.memory_space<vmem>>, vector<3x32xbf16>
    %56 = arith.truncf %54 : vector<32x16xf32> to vector<32x16xbf16>
    %cst_48 = arith.constant dense<0.000000e+00> : vector<3x16xf32>
    %57 = tpu.matmul %55, %56, %cst_48 {dimension_numbers = #tpu.dot_dimension_numbers<[1], [0], [0], [1], [0, 0, 1, 1], [], []>} : vector<3x32xbf16>, vector<32x16xbf16>, vector<3x16xf32> -> vector<3x16xf32>
    %c0_49 = arith.constant 0 : index
    %c0_50 = arith.constant 0 : index
    %58 = vector.load %arg5[%c0_49, %c0_50] : memref<16x64xbf16, #tpu.memory_space<vmem>>, vector<16x64xbf16>
    %59 = arith.truncf %57 : vector<3x16xf32> to vector<3x16xbf16>
    %cst_51 = arith.constant dense<0.000000e+00> : vector<3x64xf32>
    %60 = tpu.matmul %59, %58, %cst_51 {dimension_numbers = #tpu.dot_dimension_numbers<[1], [0], [0], [1], [0, 0, 1, 1], [], []>} : vector<3x16xbf16>, vector<16x64xbf16>, vector<3x64xf32> -> vector<3x64xf32>
    %cst_52 = arith.constant dense<0.000000e+00> : vector<32xf32>
    %61 = vector.multi_reduction <add>, %54, %cst_52 [1] : vector<32x16xf32> to vector<32xf32>
    %62 = vector.shape_cast %61 : vector<32xf32> to vector<32x1xf32>
    %cst_53 = arith.constant 6.250000e-02 : f32
    %63 = vector.broadcast %cst_53 : f32 to vector<32x1xf32>
    %64 = arith.mulf %62, %63 : vector<32x1xf32>
    %c0_54 = arith.constant 0 : index
    %c0_55 = arith.constant 0 : index
    %65 = vector.load %arg14[%c0_54, %c0_55] : memref<3x32xbf16, #tpu.memory_space<vmem>>, vector<3x32xbf16>
    %66 = arith.truncf %64 : vector<32x1xf32> to vector<32x1xbf16>
    %cst_56 = arith.constant dense<0.000000e+00> : vector<3x1xf32>
    %67 = tpu.matmul %65, %66, %cst_56 {dimension_numbers = #tpu.dot_dimension_numbers<[1], [0], [0], [1], [0, 0, 1, 1], [], []>} : vector<3x32xbf16>, vector<32x1xbf16>, vector<3x1xf32> -> vector<3x1xf32>
    %c0_57 = arith.constant 0 : index
    %c0_58 = arith.constant 0 : index
    %68 = vector.load %arg15[%c0_57, %c0_58] : memref<3x1xf32, #tpu.memory_space<vmem>>, vector<3x1xf32>
    %69 = arith.addf %67, %68 : vector<3x1xf32>
    %c0_59 = arith.constant 0 : index
    %c0_60 = arith.constant 0 : index
    %c0_61 = arith.constant 0 : index
    %70 = vector.load %arg16[%c0_59, %c0_60, %c0_61] : memref<1x3x65xf32, #tpu.memory_space<vmem>>, vector<1x3x64xf32>
    %71 = vector.shape_cast %70 : vector<1x3x64xf32> to vector<3x64xf32>
    %72 = vector.shape_cast %60 : vector<3x64xf32> to vector<1x3x64xf32>
    tpu.vector_store %arg16[%c0_59, %c0_60, %c0_61], %72 {strides = array<i32>} : memref<1x3x65xf32, #tpu.memory_space<vmem>>, vector<1x3x64xf32>,
    %c0_62 = arith.constant 0 : index
    %c0_63 = arith.constant 0 : index
    %c64 = arith.constant 64 : index
    %73 = vector.load %arg16[%c0_62, %c0_63, %c64] : memref<1x3x65xf32, #tpu.memory_space<vmem>>, vector<1x3x1xf32>
    %74 = vector.shape_cast %73 : vector<1x3x1xf32> to vector<3x1xf32>
    %75 = vector.shape_cast %69 : vector<3x1xf32> to vector<1x3x1xf32>
    tpu.vector_store %arg16[%c0_62, %c0_63, %c64], %75 {strides = array<i32>} : memref<1x3x65xf32, #tpu.memory_space<vmem>>, vector<1x3x1xf32>,
    return
  }
  func.func @transform_0(%arg0: i32) -> (i32, i32, i32) {
    %c0_i32 = arith.constant 0 : i32
    %c0_i32_0 = arith.constant 0 : i32
    %c0_i32_1 = arith.constant 0 : i32
    return %arg0, %c0_i32, %c0_i32_0 : i32, i32, i32
  }
  func.func @transform_1(%arg0: i32) -> (i32, i32, i32) {
    %c0_i32 = arith.constant 0 : i32
    %c0_i32_0 = arith.constant 0 : i32
    %c0_i32_1 = arith.constant 0 : i32
    return %arg0, %c0_i32, %c0_i32_0 : i32, i32, i32
  }
  func.func @transform_2(%arg0: i32) -> (i32, i32, i32) {
    %c0_i32 = arith.constant 0 : i32
    %c0_i32_0 = arith.constant 0 : i32
    %c0_i32_1 = arith.constant 0 : i32
    return %arg0, %c0_i32, %c0_i32_0 : i32, i32, i32
  }
  func.func @transform_3(%arg0: i32) -> (i32, i32) {
    %c0_i32 = arith.constant 0 : i32
    %c0_i32_0 = arith.constant 0 : i32
    %c0_i32_1 = arith.constant 0 : i32
    return %c0_i32, %c0_i32_0 : i32, i32
  }
  func.func @transform_4(%arg0: i32) -> (i32, i32) {
    %c0_i32 = arith.constant 0 : i32
    %c0_i32_0 = arith.constant 0 : i32
    %c0_i32_1 = arith.constant 0 : i32
    return %c0_i32, %c0_i32_0 : i32, i32
  }
  func.func @transform_5(%arg0: i32) -> (i32, i32) {
    %c0_i32 = arith.constant 0 : i32
    %c0_i32_0 = arith.constant 0 : i32
    %c0_i32_1 = arith.constant 0 : i32
    return %c0_i32, %c0_i32_0 : i32, i32
  }
  func.func @transform_6(%arg0: i32) -> (i32, i32) {
    %c0_i32 = arith.constant 0 : i32
    %c0_i32_0 = arith.constant 0 : i32
    %c0_i32_1 = arith.constant 0 : i32
    return %c0_i32, %c0_i32_0 : i32, i32
  }
  func.func @transform_7(%arg0: i32) -> (i32, i32) {
    %c0_i32 = arith.constant 0 : i32
    %c0_i32_0 = arith.constant 0 : i32
    %c0_i32_1 = arith.constant 0 : i32
    return %c0_i32, %c0_i32_0 : i32, i32
  }
  func.func @transform_8(%arg0: i32) -> (i32, i32) {
    %c0_i32 = arith.constant 0 : i32
    %c0_i32_0 = arith.constant 0 : i32
    %c0_i32_1 = arith.constant 0 : i32
    return %c0_i32, %c0_i32_0 : i32, i32
  }
  func.func @transform_9(%arg0: i32) -> (i32, i32) {
    %c0_i32 = arith.constant 0 : i32
    %c0_i32_0 = arith.constant 0 : i32
    %c0_i32_1 = arith.constant 0 : i32
    return %c0_i32, %c0_i32_0 : i32, i32
  }
  func.func @transform_10(%arg0: i32) -> (i32, i32, i32) {
    %c0_i32 = arith.constant 0 : i32
    %c0_i32_0 = arith.constant 0 : i32
    %c0_i32_1 = arith.constant 0 : i32
    %c0_i32_2 = arith.constant 0 : i32
    return %c0_i32, %c0_i32_0, %c0_i32_1 : i32, i32, i32
  }
  func.func @transform_11(%arg0: i32) -> (i32, i32, i32) {
    %c0_i32 = arith.constant 0 : i32
    %c0_i32_0 = arith.constant 0 : i32
    %c0_i32_1 = arith.constant 0 : i32
    %c0_i32_2 = arith.constant 0 : i32
    return %c0_i32, %c0_i32_0, %c0_i32_1 : i32, i32, i32
  }
  func.func @transform_12(%arg0: i32) -> (i32, i32) {
    %c0_i32 = arith.constant 0 : i32
    %c0_i32_0 = arith.constant 0 : i32
    %c0_i32_1 = arith.constant 0 : i32
    return %c0_i32, %c0_i32_0 : i32, i32
  }
  func.func @transform_13(%arg0: i32) -> (i32, i32) {
    %c0_i32 = arith.constant 0 : i32
    %c0_i32_0 = arith.constant 0 : i32
    %c0_i32_1 = arith.constant 0 : i32
    return %c0_i32, %c0_i32_0 : i32, i32
  }
  func.func @transform_14(%arg0: i32) -> (i32, i32) {
    %c0_i32 = arith.constant 0 : i32
    %c0_i32_0 = arith.constant 0 : i32
    %c0_i32_1 = arith.constant 0 : i32
    return %c0_i32, %c0_i32_0 : i32, i32
  }
  func.func @transform_15(%arg0: i32) -> (i32, i32, i32) {
    %c0_i32 = arith.constant 0 : i32
    %c0_i32_0 = arith.constant 0 : i32
    %c0_i32_1 = arith.constant 0 : i32
    return %arg0, %c0_i32, %c0_i32_0 : i32, i32, i32
  }
}

</mosaic_0001>

<llo_original>
// kernel: cmr_forward.2
$region0: #{cmr_forward.2}
  #allocation0 [shape = 'u32[]', space=smem, size = 0x4, offset = 0x4, fixed_abs, tag = 'smem constant byte address 0x4 - core index']
  #allocation1 [shape = 'u32[144,128]{1,0:T(1,128)}', space=vmem, size = 0x12000, scoped, tag = 'internal scratch']
  #allocation2 [shape = 'f32[2,384]{1,0:T(2,128)}', space=vmem, size = 0xc00, scoped, tag = 'scratch operand']
  %s0 = inlined_call_operand.vmem [shape: f32[2,32], index: 0, kind: input, shape index: {}]
  %s1 = inlined_call_operand.vmem [shape: bf16[32,384], index: 1, kind: input, shape index: {}]
  %s2 = inlined_call_operand.vmem [shape: f32[1,384], index: 2, kind: input, shape index: {}]
  %s3 = inlined_call_operand.hbm [shape: bf16[226,256], index: 3, kind: input, shape index: {}]
  %s4 = inlined_call_operand.vmem [shape: f32[1,256], index: 4, kind: input, shape index: {}]
  %s5 = inlined_call_operand.vmem [shape: f32[2,384], index: 5, kind: output, shape index: {0}]
  %s6 = inlined_call_operand.vmem [shape: f32[2,256], index: 6, kind: output, shape index: {1}]
  %7 = xla_tuple %s5, %s6
  %s8 = sld [smem:[#allocation0]]
  $region69: #{cmr_forward.2} parent=0
    _
  %s10 = ssub.s32 1, %s8
  %s11 = scalar_select 0, %s10, %s8
  $region1: #{cmr_forward.2} parent=0
    #allocation3 [shape = 'u8[118784]{0}', space=vmem, size = 0x1d000, scoped, tag = 'input window, operand 3']
    #allocation4 [shape = 's32[2]{0}', space=sflag, size = 0x8, scoped, tag = 'scoped memory for cmr_forward.2']
    %12 = vsyncpa [#allocation4], 0
    %s13 = scalar_lea.sflag [#allocation4], 1
    %14 = vsyncpa %s13, 0
    loop: start=0, step=1, limit=4
    $region2: #{cmr_forward.2} parent=1 // loop_pre_header
      _
    $region3: #{cmr_forward.2} parent=1 // loop_header
      %s16 = sphi 0, %s20
      %p17 = scmp.ge.s32.totalorder %s16, 4
      %s24 = sphi 0, %s24
      %s26 = sphi 0, %s24
      %s27 = sphi 0, %s26
      %s41 = sphi 0, %s27
      %s45 = sphi 0, %s45
      %s47 = sphi 0, %s45
      %s48 = sphi 0, %s47
      %s62 = sphi 0, %s48
      %s66 = sphi 0, %s66
      %s68 = sphi 0, %s66
      %s69 = sphi 0, %s68
      %s83 = sphi 0, %s69
      %s89 = sphi 0, %s91
      %s92 = sphi 0, %s89
      %s93 = sphi 0, %s92
      %s109 = sphi 0, %s93
      %s115 = sphi 0, %s117
      %s118 = sphi 0, %s115
      %s119 = sphi 0, %s118
      %s135 = sphi 0, %s119
      %s139 = sphi 0, %s139
      %s141 = sphi 0, %s139
      %s142 = sphi 0, %s141
      %s156 = sphi 0, %s142
      %s162 = sphi 0, %s164
      %s165 = sphi 0, %s162
      %s166 = sphi 0, %s165
      %s182 = sphi 0, %s166
    $region4: #{cmr_forward.2} parent=1 // loop_header_branch
      %19 = sbr.rel (%p17) target = $region8
    $region5: #{cmr_forward.2} parent=1 // loop_body
      %s21 = ssub.s32 %s16, 1
      %s22 = ssub.s32 %s16, 2
      %s23 = sadd.s32 %s16, 1
      %s25 = sadd.s32 %s24, 1
      %p28 = scmp.eq.s32.totalorder %s16, 1
      %p29 = scmp.ne.s32.totalorder %s24, %s26
      %p30 = scmp.eq.s32.totalorder %s16, 0
      %p31 = por %p29, %p30
      %p32 = scmp.ne.s32.totalorder %s24, %s26
      %p33 = scmp.eq.s32.totalorder %s21, 1
      %p34 = por %p32, %p33
      %p35 = scmp.ne.s32.totalorder %s26, %s27
      %p36 = scmp.eq.s32.totalorder %s21, 0
      %p37 = por %p35, %p36
      %p38 = scmp.ne.s32.totalorder %s26, %s27
      %p39 = scmp.eq.s32.totalorder %s22, 1
      %p40 = por %p38, %p39
      %p42 = scmp.ne.s32.totalorder %s27, %s41
      %p43 = scmp.eq.s32.totalorder %s22, 0
      %p44 = por %p42, %p43
      %s46 = sadd.s32 %s45, 1
      %p49 = scmp.eq.s32.totalorder %s16, 1
      %p50 = scmp.ne.s32.totalorder %s45, %s47
      %p51 = scmp.eq.s32.totalorder %s16, 0
      %p52 = por %p50, %p51
      %p53 = scmp.ne.s32.totalorder %s45, %s47
      %p54 = scmp.eq.s32.totalorder %s21, 1
      %p55 = por %p53, %p54
      %p56 = scmp.ne.s32.totalorder %s47, %s48
      %p57 = scmp.eq.s32.totalorder %s21, 0
      %p58 = por %p56, %p57
      %p59 = scmp.ne.s32.totalorder %s47, %s48
      %p60 = scmp.eq.s32.totalorder %s22, 1
      %p61 = por %p59, %p60
      %p63 = scmp.ne.s32.totalorder %s48, %s62
      %p64 = scmp.eq.s32.totalorder %s22, 0
      %p65 = por %p63, %p64
      %s67 = sadd.s32 %s66, 1
      %p70 = scmp.eq.s32.totalorder %s16, 1
      %p71 = scmp.ne.s32.totalorder %s66, %s68
      %p72 = scmp.eq.s32.totalorder %s16, 0
      %p73 = por %p71, %p72
      %p74 = scmp.ne.s32.totalorder %s66, %s68
      %p75 = scmp.eq.s32.totalorder %s21, 1
      %p76 = por %p74, %p75
      %p77 = scmp.ne.s32.totalorder %s68, %s69
      %p78 = scmp.eq.s32.totalorder %s21, 0
      %p79 = por %p77, %p78
      %p80 = scmp.ne.s32.totalorder %s68, %s69
      %p81 = scmp.eq.s32.totalorder %s22, 1
      %p82 = por %p80, %p81
      %p84 = scmp.ne.s32.totalorder %s69, %s83
      %p85 = scmp.eq.s32.totalorder %s22, 0
      %p86 = por %p84, %p85
      %s87 = ssub.s32 %s16, %s23
      %p88 = scmp.eq.s32.totalorder %s87, 0
      %s90 = sadd.s32 %s89, 1
      %s91 = scalar_select %p88, %s89, %s90
      %p94 = pneg %p88
      %p95 = scmp.eq.s32.totalorder %s16, 1
      %p96 = por %p94, %p95
      %p97 = scmp.ne.s32.totalorder %s89, %s92
      %p98 = scmp.eq.s32.totalorder %s16, 0
      %p99 = por %p97, %p98
      %p100 = scmp.ne.s32.totalorder %s89, %s92
      %p101 = scmp.eq.s32.totalorder %s21, 1
      %p102 = por %p100, %p101
      %p103 = scmp.ne.s32.totalorder %s92, %s93
      %p104 = scmp.eq.s32.totalorder %s21, 0
      %p105 = por %p103, %p104
      %p106 = scmp.ne.s32.totalorder %s92, %s93
      %p107 = scmp.eq.s32.totalorder %s22, 1
      %p108 = por %p106, %p107
      %p110 = scmp.ne.s32.totalorder %s93, %s109
      %p111 = scmp.eq.s32.totalorder %s22, 0
      %p112 = por %p110, %p111
      %s113 = ssub.s32 %s16, %s23
      %p114 = scmp.eq.s32.totalorder %s113, 0
      %s116 = sadd.s32 %s115, 1
      %s117 = scalar_select %p114, %s115, %s116
      %p120 = pneg %p114
      %p121 = scmp.eq.s32.totalorder %s16, 1
      %p122 = por %p120, %p121
      %p123 = scmp.ne.s32.totalorder %s115, %s118
      %p124 = scmp.eq.s32.totalorder %s16, 0
      %p125 = por %p123, %p124
      %p126 = scmp.ne.s32.totalorder %s115, %s118
      %p127 = scmp.eq.s32.totalorder %s21, 1
      %p128 = por %p126, %p127
      %p129 = scmp.ne.s32.totalorder %s118, %s119
      %p130 = scmp.eq.s32.totalorder %s21, 0
      %p131 = por %p129, %p130
      %p132 = scmp.ne.s32.totalorder %s118, %s119
      %p133 = scmp.eq.s32.totalorder %s22, 1
      %p134 = por %p132, %p133
      %p136 = scmp.ne.s32.totalorder %s119, %s135
      %p137 = scmp.eq.s32.totalorder %s22, 0
      %p138 = por %p136, %p137
      %s140 = sadd.s32 %s139, 1
      %p143 = scmp.eq.s32.totalorder %s16, 1
      %p144 = scmp.ne.s32.totalorder %s139, %s141
      %p145 = scmp.eq.s32.totalorder %s16, 0
      %p146 = por %p144, %p145
      %p147 = scmp.ne.s32.totalorder %s139, %s141
      %p148 = scmp.eq.s32.totalorder %s21, 1
      %p149 = por %p147, %p148
      %p150 = scmp.ne.s32.totalorder %s141, %s142
      %p151 = scmp.eq.s32.totalorder %s21, 0
      %p152 = por %p150, %p151
      %p153 = scmp.ne.s32.totalorder %s141, %s142
      %p154 = scmp.eq.s32.totalorder %s22, 1
      %p155 = por %p153, %p154
      %p157 = scmp.ne.s32.totalorder %s142, %s156
      %p158 = scmp.eq.s32.totalorder %s22, 0
      %p159 = por %p157, %p158
      %s160 = ssub.s32 %s16, %s23
      %p161 = scmp.eq.s32.totalorder %s160, 0
      %s163 = sadd.s32 %s162, 1
      %s164 = scalar_select %p161, %s162, %s163
      %p167 = pneg %p161
      %p168 = scmp.eq.s32.totalorder %s16, 1
      %p169 = por %p167, %p168
      %p170 = scmp.ne.s32.totalorder %s162, %s165
      %p171 = scmp.eq.s32.totalorder %s16, 0
      %p172 = por %p170, %p171
      %p173 = scmp.ne.s32.totalorder %s162, %s165
      %p174 = scmp.eq.s32.totalorder %s21, 1
      %p175 = por %p173, %p174
      %p176 = scmp.ne.s32.totalorder %s165, %s166
      %p177 = scmp.eq.s32.totalorder %s21, 0
      %p178 = por %p176, %p177
      %p179 = scmp.ne.s32.totalorder %s165, %s166
      %p180 = scmp.eq.s32.totalorder %s22, 1
      %p181 = por %p179, %p180
      %p183 = scmp.ne.s32.totalorder %s166, %s182
      %p184 = scmp.eq.s32.totalorder %s22, 0
      %p185 = por %p183, %p184
      %p186 = scmp.le.s32.totalorder 1, %s16
      %p187 = scmp.lt.s32.totalorder %s16, 3
      %p188 = pnand %p186, %p187
      %p189 = pneg %p188
      // Predicated region
      $region9: #{cmr_forward.2} parent=5 // pred_check
        _
      $region10: #{cmr_forward.2} parent=5 // pred_check_branch
        %191 = sbr.rel (%p188) target = $region12
      $region11: #{cmr_forward.2} parent=5 // pred_region
        %s192 = ssub.s32 %s16, 1
        // Predicated region
        $region13: #{cmr_forward.2} parent=11 // pred_check
          %p193 = pneg %p37
        $region14: #{cmr_forward.2} parent=11 // pred_check_branch
          %195 = sbr.rel (%p193) target = $region16
        $region15: #{cmr_forward.2} parent=11 // pred_region
          _
        $region16: #{cmr_forward.2} parent=11 // pred_fallthru
          _
        // Predicated region
        $region17: #{cmr_forward.2} parent=11 // pred_check
          %p196 = pneg %p58
        $region18: #{cmr_forward.2} parent=11 // pred_check_branch
          %198 = sbr.rel (%p196) target = $region20
        $region19: #{cmr_forward.2} parent=11 // pred_region
          _
        $region20: #{cmr_forward.2} parent=11 // pred_fallthru
          _
        // Predicated region
        $region21: #{cmr_forward.2} parent=11 // pred_check
          %p199 = pneg %p79
        $region22: #{cmr_forward.2} parent=11 // pred_check_branch
          %201 = sbr.rel (%p199) target = $region24
        $region23: #{cmr_forward.2} parent=11 // pred_region
          _
        $region24: #{cmr_forward.2} parent=11 // pred_fallthru
          _
      $region12: #{cmr_forward.2} parent=5 // pred_fallthru
        _
      %p202 = scmp.lt.s32.totalorder %s16, 2
      // Predicated region
      $region25: #{cmr_forward.2} parent=5 // pred_check
        %p203 = pneg %p202
      $region26: #{cmr_forward.2} parent=5 // pred_check_branch
        %205 = sbr.rel (%p203) target = $region28
      $region27: #{cmr_forward.2} parent=5 // pred_region
        // Predicated region
        $region29: #{cmr_forward.2} parent=27 // pred_check
          %p206 = pneg %p99
        $region30: #{cmr_forward.2} parent=27 // pred_check_branch
          %208 = sbr.rel (%p206) target = $region32
        $region31: #{cmr_forward.2} parent=27 // pred_region
          %s209 = sand.u32 %s89, 1
          %s210 = scalar_lea.sflag [#allocation4], %s209
          %s211 = sand.u32 %s89, 1
          %s212 = smul.addr %s211, 116
          %s213 = scalar_lea.vmem [#allocation3], %s212
          %s215 = ssub.s32 1856, 1856
          %216 = vsyncadd %s210, %s215
          %s217 = smul.addr %s16, 64
          %s218 = scalar_lea.hbm %s3, %s217
          %s219 = sshll.u32 %s213, 4
          %s220 = int_to_ptr.vmem [resolvable:$true] %s219
          %225 = dma.hbm_to_vmem [thread:$0]  %s218, 1856, %s220, %s210, 128, 64, 4
        $region32: #{cmr_forward.2} parent=27 // pred_fallthru
          _
        // Predicated region
        $region33: #{cmr_forward.2} parent=27 // pred_check
          %p226 = pneg %p125
        $region34: #{cmr_forward.2} parent=27 // pred_check_branch
          %228 = sbr.rel (%p226) target = $region36
        $region35: #{cmr_forward.2} parent=27 // pred_region
          %p229 = scmp.lt.s32.totalorder %s16, 1
          %s230 = scalar_select %p229, %s16, 1
          %s231 = scalar_lea.vmem %s4, %s230
        $region36: #{cmr_forward.2} parent=27 // pred_fallthru
          _
      $region28: #{cmr_forward.2} parent=5 // pred_fallthru
        _
      %p232 = scmp.le.s32.totalorder 1, %s16
      %p233 = scmp.lt.s32.totalorder %s16, 3
      %p234 = pnand %p232, %p233
      %p235 = pneg %p234
      // Predicated region
      $region37: #{cmr_forward.2} parent=5 // pred_check
        _
      $region38: #{cmr_forward.2} parent=5 // pred_check_branch
        %237 = sbr.rel (%p234) target = $region40
      $region39: #{cmr_forward.2} parent=5 // pred_region
        %s238 = ssub.s32 %s16, 1
        %s239 = sand.u32 %s92, 1
        %s240 = scalar_lea.sflag [#allocation4], %s239
        %s241 = sand.u32 %s92, 1
        %s242 = smul.addr %s241, 116
        %s243 = scalar_lea.vmem [#allocation3], %s242
        // Predicated region
        $region41: #{cmr_forward.2} parent=39 // pred_check
          %p244 = pneg %p105
        $region42: #{cmr_forward.2} parent=39 // pred_check_branch
          %246 = sbr.rel (%p244) target = $region44
        $region43: #{cmr_forward.2} parent=39 // pred_region
          %247 = dma.done %s240, 1856
        $region44: #{cmr_forward.2} parent=39 // pred_fallthru
          _
        %p248 = pneg %p37
        %p249 = pneg %p34
        %p250 = pneg %p58
        %p251 = pneg %p55
        %p252 = pneg %p79
        %p253 = pneg %p76
        %s254 = sand.u32 %s92, 1
        %s255 = scalar_lea.sflag [#allocation4], %s254
        %s256 = sand.u32 %s92, 1
        %s257 = smul.addr %s256, 116
        %s258 = scalar_lea.vmem [#allocation3], %s257
        %p259 = pneg %p105
        %p260 = pneg %p102
        %p261 = scmp.lt.s32.totalorder %s21, 1
        %s262 = scalar_select %p261, %s21, 1
        %s263 = scalar_lea.vmem %s4, %s262
        %p264 = pneg %p131
        %p265 = pneg %p128
        %p266 = pneg %p152
        %p267 = pneg %p149
        %p268 = pneg %p178
        %p269 = pneg %p175
        %p270 = scmp.lt.s32.totalorder %s21, 1
        %s271 = scalar_select %p270, %s21, 1
        %s272 = smul.addr %s271, 2
        %s273 = scalar_lea.vmem %s6, %s272
        %p274 = scmp.lt.s32.totalorder %s21, 1
        %s275 = scalar_select %p274, %s21, 1
        %s276 = scalar_lea.vmem %s4, %s275
        %p277 = scmp.lt.s32.totalorder %s21, 1
        %s278 = scalar_select %p277, %s21, 1
        %s279 = smul.addr %s278, 2
        %s280 = scalar_lea.vmem %s6, %s279
        %p282 = scmp.eq.s32.totalorder %s21, 0
        // Predicated region
        $region45: #{cmr_forward.2} parent=39 // pred_check
          %p283 = pneg %p282
        $region46: #{cmr_forward.2} parent=39 // pred_check_branch
          %285 = sbr.rel (%p283) target = $region48
        $region47: #{cmr_forward.2} parent=39 // pred_region
          %v286 = vld [vmem:[%s0] sm:$0x3]
          %v287 = vld [vmem:[%s1] sm:$0xff]
          %v288 = vld [vmem:[%s1 + $0x8] sm:$0xf]
          %v289 = vld [vmem:[%s1 + $0xc] sm:$0xff]
          %v290 = vld [vmem:[%s1 + $0x14] sm:$0xf]
          %v291 = vld [vmem:[%s1 + $0x18] sm:$0xff]
          %v292 = vld [vmem:[%s1 + $0x20] sm:$0xf]
          %v293 = vld [vmem:[%s1 + $0x24] sm:$0xff]
          %v294 = vld [vmem:[%s1 + $0x2c] sm:$0xf]
          %v295 = vpack.c.bf16 %v286, %v286
          %v296 = vld [vmem:[%s2] sm:$0x7]
          %v298 = vlaneseq
          %v299 = vshrl.u32 %v298, 7
          %v300 = vsub.s32 0, %v299
          %v301 = vrot.slane %v296, %v300
          %v302 = vlaneseq
          %v303 = vshrl.u32 %v302, 7
          %v304 = vsub.s32 1, %v303
          %v305 = vrot.slane %v296, %v304
          %v306 = vlaneseq
          %v307 = vshrl.u32 %v306, 7
          %v308 = vsub.s32 2, %v307
          %v309 = vrot.slane %v296, %v308
          %v321 = vunpack.c.l.b16 %v287
          %v322 = vunpack.c.h.b16 %v287
          %v323 = vunpack.c.l.b16 %v288
          %v324 = vunpack.c.l.b16 %v289
          %v325 = vunpack.c.h.b16 %v289
          %v326 = vunpack.c.l.b16 %v290
          %v327 = vunpack.c.l.b16 %v291
          %v328 = vunpack.c.h.b16 %v291
          %v329 = vunpack.c.l.b16 %v292
          %v330 = vunpack.c.l.b16 %v293
          %v331 = vunpack.c.h.b16 %v293
          %v332 = vunpack.c.l.b16 %v294
          %v333 = vpack.c.b16 %v324, %v321
          %v334 = vpack.c.b16 %v325, %v322
          %v335 = vpack.c.b16 %v326, %v323
          %v336 = vpack.c.b16 %v330, %v327
          %v337 = vpack.c.b16 %v331, %v328
          %v338 = vpack.c.b16 %v332, %v329
          %vm345 = vcmask 261120
          %v347 = vsel %vm345, %v295, 0
          %349 = vmatprep.subr.bf16.mxu0 0
          %350 = vmatpush1.bf16.msra.mxu0 0
          %351 = vmatprep.subr.bf16.mxu0 0
          %352 = vmatpush1.bf16.msra.mxu0 0
          %353 = vmatprep.subr.bf16.mxu0 0
          %354 = vmatpush1.bf16.msra.mxu0 0
          %355 = vmatprep.subr.bf16.mxu0 0
          %356 = vmatpush1.bf16.msra.mxu0 0
          %357 = vmatprep.subr.bf16.mxu0 0
          %358 = vmatpush1.bf16.msra.mxu0 0
          %359 = vmatprep.subr.bf16.mxu0 0
          %360 = vmatpush1.bf16.msra.mxu0 0
          %361 = vmatprep.subr.bf16.mxu0 %v337
          %362 = vmatpush1.bf16.msra.mxu0 %v336
          %363 = vmatprep.subr.bf16.mxu0 %v334
          %364 = vmatpush1.bf16.msra.mxu0 %v333
          %365 = vmatprep.subr.bf16.mxu0 0
          %366 = vmatpush2.bf16.msra.mxu0 0
          %367 = vmatprep.subr.bf16.mxu0 0
          %368 = vmatpush2.bf16.msra.mxu0 0
          %369 = vmatprep.subr.bf16.mxu0 0
          %370 = vmatpush2.bf16.msra.mxu0 0
          %371 = vmatprep.subr.bf16.mxu0 0
          %372 = vmatpush2.bf16.msra.mxu0 0
          %373 = vmatprep.subr.bf16.mxu0 0
          %374 = vmatpush2.bf16.msra.mxu0 0
          %375 = vmatprep.subr.bf16.mxu0 0
          %376 = vmatpush2.bf16.msra.mxu0 0
          %377 = vmatprep.subr.bf16.mxu0 0
          %378 = vmatpush2.bf16.msra.mxu0 0
          %379 = vmatprep.subr.bf16.mxu0 0
          %380 = vmatpush2.bf16.msra.mxu0 0
          %381 = vmatprep.mubr.bf16.mxu0 0
          %382 = vmatmul.mubr.bf16.gmra.mxu0 %v347
          %v383 = vpop.f32.mrf.mxu0
          %v384 = vadd.f32 %v301, %v383
          %v385 = vpop.f32.mrf.mxu0
          %v386 = vadd.f32 %v305, %v385
          %v387 = vpop.f32.mrf.mxu0
          %v388 = vpop.f32.mrf.mxu0
          %389 = vdwg.mxu0
          %390 = vmatprep.subr.bf16.mxu0 0
          %391 = vmatpush1.bf16.msra.mxu0 0
          %392 = vmatprep.subr.bf16.mxu0 0
          %393 = vmatpush1.bf16.msra.mxu0 0
          %394 = vmatprep.subr.bf16.mxu0 0
          %395 = vmatpush1.bf16.msra.mxu0 0
          %396 = vmatprep.subr.bf16.mxu0 0
          %397 = vmatpush1.bf16.msra.mxu0 0
          %398 = vmatprep.subr.bf16.mxu0 0
          %399 = vmatpush1.bf16.msra.mxu0 0
          %400 = vmatprep.subr.bf16.mxu0 0
          %401 = vmatpush1.bf16.msra.mxu0 0
          %402 = vmatprep.subr.bf16.mxu0 0
          %403 = vmatpush1.bf16.msra.mxu0 %v338
          %404 = vmatprep.subr.bf16.mxu0 0
          %405 = vmatpush1.bf16.msra.mxu0 %v335
          %406 = vmatprep.subr.bf16.mxu0 0
          %407 = vmatpush2.bf16.msra.mxu0 0
          %408 = vmatprep.subr.bf16.mxu0 0
          %409 = vmatpush2.bf16.msra.mxu0 0
          %410 = vmatprep.subr.bf16.mxu0 0
          %411 = vmatpush2.bf16.msra.mxu0 0
          %412 = vmatprep.subr.bf16.mxu0 0
          %413 = vmatpush2.bf16.msra.mxu0 0
          %414 = vmatprep.subr.bf16.mxu0 0
          %415 = vmatpush2.bf16.msra.mxu0 0
          %416 = vmatprep.subr.bf16.mxu0 0
          %417 = vmatpush2.bf16.msra.mxu0 0
          %418 = vmatprep.subr.bf16.mxu0 0
          %419 = vmatpush2.bf16.msra.mxu0 0
          %420 = vmatprep.subr.bf16.mxu0 0
          %421 = vmatpush2.bf16.msra.mxu0 0
          %422 = vmatprep.mubr.bf16.mxu0 0
          %423 = vmatmul.mubr.bf16.gmra.mxu0 %v347
          %v424 = vpop.f32.mrf.mxu0
          %v425 = vadd.f32 %v309, %v424
          %v426 = vpop.f32.mrf.mxu0
          %v427 = vpop.f32.mrf.mxu0
          %v428 = vpop.f32.mrf.mxu0
          %429 = vdwg.mxu0
          %v433 = vcombine.low %v384, %v386
          %v435 = vunpack.c.l.s4 1983009808
          %v436 = vunpack.c.0.s8 %v435
          %v437 = vlaneseq
          %v438 = vshrl.u32 %v437, 7
          %v439 = vsub.s32 %v436, %v438
          %v440 = vrot.slane %v433, %v439
          %v442 = vunpack.c.l.s4 1983009808
          %v443 = vunpack.c.0.s8 %v442
          %v444 = vlaneseq
          %v445 = vshrl.u32 %v444, 7
          %v446 = vsub.s32 %v443, %v445
          %v447 = vrot.slane %v425, %v446
          %v448 = vcombine.low %v440, %v447
          %450 = vst [vmem:[#allocation2] sm:$0x3f] %v448
          %451 = vst [vmem:[%s5] sm:$0x3f] %v448
        $region48: #{cmr_forward.2} parent=39 // pred_fallthru
          _
        %v452 = vld [vmem:[#allocation2] sm:$0xf]
        %v453 = vld [vmem:[%s243] sm:$0xf]
        %v454 = vld [vmem:[%s243 + $0x4] sm:$0xf]
        %v455 = vld [vmem:[%s243 + $0x8] sm:$0xf]
        %v456 = vld [vmem:[%s243 + $0xc] sm:$0xf]
        %v457 = vld [vmem:[%s243 + $0x10] sm:$0xf]
        %v458 = vld [vmem:[%s243 + $0x14] sm:$0xf]
        %v459 = vld [vmem:[%s243 + $0x18] sm:$0xf]
        %v460 = vld [vmem:[%s243 + $0x1c] sm:$0xf]
        %v461 = vld [vmem:[%s243 + $0x20] sm:$0xf]
        %v462 = vld [vmem:[%s243 + $0x24] sm:$0xf]
        %v463 = vld [vmem:[%s243 + $0x28] sm:$0xf]
        %v464 = vld [vmem:[%s243 + $0x2c] sm:$0xf]
        %v465 = vld [vmem:[%s243 + $0x30] sm:$0xf]
        %v466 = vld [vmem:[%s243 + $0x34] sm:$0xf]
        %v467 = vld [vmem:[%s243 + $0x38] sm:$0xf]
        %v468 = vld [vmem:[%s243 + $0x3c] sm:$0xf]
        %v469 = vld [vmem:[%s243 + $0x40] sm:$0xf]
        %v470 = vld [vmem:[%s243 + $0x44] sm:$0xf]
        %v471 = vld [vmem:[%s243 + $0x48] sm:$0xf]
        %v472 = vld [vmem:[%s243 + $0x4c] sm:$0xf]
        %v473 = vld [vmem:[%s243 + $0x50] sm:$0xf]
        %v474 = vld [vmem:[%s243 + $0x54] sm:$0xf]
        %v475 = vld [vmem:[%s243 + $0x58] sm:$0xf]
        %v476 = vld [vmem:[%s243 + $0x5c] sm:$0xf]
        %v477 = vld [vmem:[%s243 + $0x60] sm:$0xf]
        %v478 = vld [vmem:[%s243 + $0x64] sm:$0xf]
        %v479 = vld [vmem:[%s243 + $0x68] sm:$0xf]
        %v480 = vld [vmem:[%s243 + $0x6c] sm:$0xf]
        %v481 = vld [vmem:[%s243 + $0x70] sm:$0x1]
        %v484 = vunpack.c.l.s4 1983009808
        %v485 = vunpack.c.0.s8 %v484
        %v486 = vlaneseq
        %v487 = vshrl.u32 %v486, 7
        %v488 = vsub.s32 %v485, %v487
        %v489 = vrot.slane %v452, %v488
        %v490 = vcombine.high %v489, %v489
        %v493 = vpack.c.bf16 %v489, %v489
        %v494 = vpack.c.bf16 %v490, %v490
        %v495 = vld [vmem:[%s276] sm:$0x1]
        %v497 = vlaneseq
        %v498 = vshrl.u32 %v497, 7
        %v499 = vsub.s32 0, %v498
        %v500 = vrot.slane %v495, %v499
        %v531 = vunpack.c.l.b16 %v453
        %v532 = vunpack.c.l.b16 %v454
        %v533 = vunpack.c.l.b16 %v455
        %v534 = vunpack.c.l.b16 %v456
        %v535 = vunpack.c.l.b16 %v457
        %v536 = vunpack.c.l.b16 %v458
        %v537 = vunpack.c.l.b16 %v459
        %v538 = vunpack.c.l.b16 %v460
        %v539 = vunpack.c.l.b16 %v461
        %v540 = vunpack.c.l.b16 %v462
        %v541 = vunpack.c.l.b16 %v463
        %v542 = vunpack.c.l.b16 %v464
        %v543 = vunpack.c.l.b16 %v465
        %v544 = vunpack.c.l.b16 %v466
        %v545 = vunpack.c.l.b16 %v467
        %v546 = vunpack.c.l.b16 %v468
        %v547 = vunpack.c.l.b16 %v469
        %v548 = vunpack.c.l.b16 %v470
        %v549 = vunpack.c.l.b16 %v471
        %v550 = vunpack.c.l.b16 %v472
        %v551 = vunpack.c.l.b16 %v473
        %v552 = vunpack.c.l.b16 %v474
        %v553 = vunpack.c.l.b16 %v475
        %v554 = vunpack.c.l.b16 %v476
        %v555 = vunpack.c.l.b16 %v477
        %v556 = vunpack.c.l.b16 %v478
        %v557 = vunpack.c.l.b16 %v479
        %v558 = vunpack.c.l.b16 %v480
        %v559 = vunpack.c.l.b16 %v481
        %v560 = vpack.c.b16 %v532, %v531
        %v561 = vpack.c.b16 %v534, %v533
        %v562 = vpack.c.b16 %v536, %v535
        %v563 = vpack.c.b16 %v538, %v537
        %v564 = vpack.c.b16 %v540, %v539
        %v565 = vpack.c.b16 %v542, %v541
        %v566 = vpack.c.b16 %v544, %v543
        %v567 = vpack.c.b16 %v546, %v545
        %v568 = vpack.c.b16 %v548, %v547
        %v569 = vpack.c.b16 %v550, %v549
        %v570 = vpack.c.b16 %v552, %v551
        %v571 = vpack.c.b16 %v554, %v553
        %v572 = vpack.c.b16 %v556, %v555
        %v573 = vpack.c.b16 %v558, %v557
        %v574 = vpack.c.b16 %v559, %v559
        %vm589 = vcmask 801792
        %v591 = vsel %vm589, %v494, 0
        %vm593 = vcmask 1040384
        %v595 = vsel %vm593, %v574, 0
        %597 = vmatprep.subr.bf16.mxu0 0
        %598 = vmatpush1.bf16.msra.mxu0 %v567
        %599 = vmatprep.subr.bf16.mxu0 0
        %600 = vmatpush1.bf16.msra.mxu0 %v566
        %601 = vmatprep.subr.bf16.mxu0 0
        %602 = vmatpush1.bf16.msra.mxu0 %v565
        %603 = vmatprep.subr.bf16.mxu0 0
        %604 = vmatpush1.bf16.msra.mxu0 %v564
        %605 = vmatprep.subr.bf16.mxu0 0
        %606 = vmatpush1.bf16.msra.mxu0 %v563
        %607 = vmatprep.subr.bf16.mxu0 0
        %608 = vmatpush1.bf16.msra.mxu0 %v562
        %609 = vmatprep.subr.bf16.mxu0 0
        %610 = vmatpush1.bf16.msra.mxu0 %v561
        %611 = vmatprep.subr.bf16.mxu0 0
        %612 = vmatpush1.bf16.msra.mxu0 %v560
        %613 = vmatprep.subr.bf16.mxu0 0
        %614 = vmatpush2.bf16.msra.mxu0 0
        %615 = vmatprep.subr.bf16.mxu0 0
        %616 = vmatpush2.bf16.msra.mxu0 %v595
        %617 = vmatprep.subr.bf16.mxu0 0
        %618 = vmatpush2.bf16.msra.mxu0 %v573
        %619 = vmatprep.subr.bf16.mxu0 0
        %620 = vmatpush2.bf16.msra.mxu0 %v572
        %621 = vmatprep.subr.bf16.mxu0 0
        %622 = vmatpush2.bf16.msra.mxu0 %v571
        %623 = vmatprep.subr.bf16.mxu0 0
        %624 = vmatpush2.bf16.msra.mxu0 %v570
        %625 = vmatprep.subr.bf16.mxu0 0
        %626 = vmatpush2.bf16.msra.mxu0 %v569
        %627 = vmatprep.subr.bf16.mxu0 0
        %628 = vmatpush2.bf16.msra.mxu0 %v568
        %629 = vmatprep.mubr.bf16.mxu0 %v591
        %630 = vmatmul.mubr.bf16.gmra.mxu0 %v493
        %v631 = vpop.f32.mrf.mxu0
        %v632 = vadd.f32 %v500, %v631
        %v633 = vpop.f32.mrf.mxu0
        %v634 = vpop.f32.mrf.mxu0
        %v635 = vpop.f32.mrf.mxu0
        %636 = vdwg.mxu0
        %637 = vst [vmem:[%s280] sm:$0x3] %v632
        %p638 = scmp.lt.s32.totalorder %s21, 1
        %s639 = scalar_select %p638, %s21, 1
        %s640 = smul.addr %s639, 2
        %s641 = scalar_lea.vmem %s6, %s640
        // Predicated region
        $region49: #{cmr_forward.2} parent=39 // pred_check
          %p642 = pneg %p149
        $region50: #{cmr_forward.2} parent=39 // pred_check_branch
          %644 = sbr.rel (%p642) target = $region52
        $region51: #{cmr_forward.2} parent=39 // pred_region
          _
        $region52: #{cmr_forward.2} parent=39 // pred_fallthru
          _
        // Predicated region
        $region53: #{cmr_forward.2} parent=39 // pred_check
          %p645 = pneg %p175
        $region54: #{cmr_forward.2} parent=39 // pred_check_branch
          %647 = sbr.rel (%p645) target = $region56
        $region55: #{cmr_forward.2} parent=39 // pred_region
          _
        $region56: #{cmr_forward.2} parent=39 // pred_fallthru
          _
        // Predicated region
        $region57: #{cmr_forward.2} parent=39 // pred_check
          %p648 = pneg %p149
        $region58: #{cmr_forward.2} parent=39 // pred_check_branch
          %650 = sbr.rel (%p648) target = $region60
        $region59: #{cmr_forward.2} parent=39 // pred_region
          _
        $region60: #{cmr_forward.2} parent=39 // pred_fallthru
          _
      $region40: #{cmr_forward.2} parent=5 // pred_fallthru
        _
      %p651 = scmp.le.s32.totalorder 2, %s16
      // Predicated region
      $region61: #{cmr_forward.2} parent=5 // pred_check
        %p652 = pneg %p651
      $region62: #{cmr_forward.2} parent=5 // pred_check_branch
        %654 = sbr.rel (%p652) target = $region64
      $region63: #{cmr_forward.2} parent=5 // pred_region
        %s655 = ssub.s32 %s16, 2
        // Predicated region
        $region65: #{cmr_forward.2} parent=63 // pred_check
          %p656 = pneg %p181
        $region66: #{cmr_forward.2} parent=63 // pred_check_branch
          %658 = sbr.rel (%p656) target = $region68
        $region67: #{cmr_forward.2} parent=63 // pred_region
          %p659 = scmp.lt.s32.totalorder %s22, 1
          %s660 = scalar_select %p659, %s22, 1
          %s661 = smul.addr %s660, 2
          %s662 = scalar_lea.vmem %s6, %s661
        $region68: #{cmr_forward.2} parent=63 // pred_fallthru
          _
      $region64: #{cmr_forward.2} parent=5 // pred_fallthru
        _
    $region6: #{cmr_forward.2} parent=1 // loop_footer
      %s20 = sadd.s32 1, %s16
    $region7: #{cmr_forward.2} parent=1 // loop_footer_branch
      %15 = sbr.rel target = $region3
    $region8: #{cmr_forward.2} parent=1 // loop_exit
      _
    %663 = vsyncpa [#allocation4], 1
    %s664 = scalar_lea.sflag [#allocation4], 1
    %665 = vsyncpa %s664, 1

// kernel: cmr_forward.3
$region0: #{cmr_forward.3}
  #allocation0 [shape = 'u32[]', space=smem, size = 0x4, offset = 0x4, fixed_abs, tag = 'smem constant byte address 0x4 - core index']
  #allocation1 [shape = 'u32[144,128]{1,0:T(1,128)}', space=vmem, size = 0x12000, scoped, tag = 'internal scratch']
  %s0 = inlined_call_operand.vmem [shape: f32[2,3,64], index: 0, kind: input, shape index: {}]
  %s1 = inlined_call_operand.vmem [shape: f32[2,32,1], index: 1, kind: input, shape index: {}]
  %s2 = inlined_call_operand.vmem [shape: f32[2,16,16], index: 2, kind: input, shape index: {}]
  %s3 = inlined_call_operand.vmem [shape: bf16[64,16], index: 3, kind: input, shape index: {}]
  %s4 = inlined_call_operand.vmem [shape: bf16[16,64], index: 4, kind: input, shape index: {}]
  %s5 = inlined_call_operand.vmem [shape: bf16[16,16], index: 5, kind: input, shape index: {}]
  %s6 = inlined_call_operand.vmem [shape: bf16[16,16], index: 6, kind: input, shape index: {}]
  %s7 = inlined_call_operand.vmem [shape: bf16[32,3], index: 7, kind: input, shape index: {}]
  %s8 = inlined_call_operand.vmem [shape: bf16[32,16], index: 8, kind: input, shape index: {}]
  %s9 = inlined_call_operand.vmem [shape: f32[32,1], index: 9, kind: input, shape index: {}]
  %s10 = inlined_call_operand.vmem [shape: bf16[2,32,32], index: 10, kind: input, shape index: {}]
  %s11 = inlined_call_operand.vmem [shape: f32[2,32,1], index: 11, kind: input, shape index: {}]
  %s12 = inlined_call_operand.vmem [shape: bf16[3,32], index: 12, kind: input, shape index: {}]
  %s13 = inlined_call_operand.vmem [shape: bf16[3,32], index: 13, kind: input, shape index: {}]
  %s14 = inlined_call_operand.vmem [shape: f32[3,1], index: 14, kind: input, shape index: {}]
  %s15 = inlined_call_operand.vmem [shape: f32[2,3,65], index: 15, kind: output, shape index: {}]
  %s16 = sld [smem:[#allocation0]]
  $region93: #{cmr_forward.3} parent=0
    _
  %s18 = ssub.s32 1, %s16
  %s19 = scalar_select 0, %s18, %s16
  loop: start=0, step=1, limit=4
  $region2: #{cmr_forward.3} parent=0 // loop_pre_header
    _
  $region3: #{cmr_forward.3} parent=0 // loop_header
    %s21 = sphi 0, %s25
    %p22 = scmp.ge.s32.totalorder %s21, 4
    %s31 = sphi 0, %s33
    %s34 = sphi 0, %s31
    %s35 = sphi 0, %s34
    %s51 = sphi 0, %s35
    %s57 = sphi 0, %s59
    %s60 = sphi 0, %s57
    %s61 = sphi 0, %s60
    %s77 = sphi 0, %s61
    %s83 = sphi 0, %s85
    %s86 = sphi 0, %s83
    %s87 = sphi 0, %s86
    %s103 = sphi 0, %s87
    %s107 = sphi 0, %s107
    %s109 = sphi 0, %s107
    %s110 = sphi 0, %s109
    %s124 = sphi 0, %s110
    %s128 = sphi 0, %s128
    %s130 = sphi 0, %s128
    %s131 = sphi 0, %s130
    %s145 = sphi 0, %s131
    %s149 = sphi 0, %s149
    %s151 = sphi 0, %s149
    %s152 = sphi 0, %s151
    %s166 = sphi 0, %s152
    %s170 = sphi 0, %s170
    %s172 = sphi 0, %s170
    %s173 = sphi 0, %s172
    %s187 = sphi 0, %s173
    %s191 = sphi 0, %s191
    %s193 = sphi 0, %s191
    %s194 = sphi 0, %s193
    %s208 = sphi 0, %s194
    %s212 = sphi 0, %s212
    %s214 = sphi 0, %s212
    %s215 = sphi 0, %s214
    %s229 = sphi 0, %s215
    %s233 = sphi 0, %s233
    %s235 = sphi 0, %s233
    %s236 = sphi 0, %s235
    %s250 = sphi 0, %s236
    %s254 = sphi 0, %s254
    %s256 = sphi 0, %s254
    %s257 = sphi 0, %s256
    %s271 = sphi 0, %s257
    %s275 = sphi 0, %s275
    %s277 = sphi 0, %s275
    %s278 = sphi 0, %s277
    %s292 = sphi 0, %s278
    %s296 = sphi 0, %s296
    %s298 = sphi 0, %s296
    %s299 = sphi 0, %s298
    %s313 = sphi 0, %s299
    %s317 = sphi 0, %s317
    %s319 = sphi 0, %s317
    %s320 = sphi 0, %s319
    %s334 = sphi 0, %s320
    %s338 = sphi 0, %s338
    %s340 = sphi 0, %s338
    %s341 = sphi 0, %s340
    %s355 = sphi 0, %s341
    %s361 = sphi 0, %s363
    %s364 = sphi 0, %s361
    %s365 = sphi 0, %s364
    %s381 = sphi 0, %s365
  $region4: #{cmr_forward.3} parent=0 // loop_header_branch
    %24 = sbr.rel (%p22) target = $region8
  $region5: #{cmr_forward.3} parent=0 // loop_body
    %s26 = ssub.s32 %s21, 1
    %s27 = ssub.s32 %s21, 2
    %s28 = sadd.s32 %s21, 1
    %s29 = ssub.s32 %s21, %s28
    %p30 = scmp.eq.s32.totalorder %s29, 0
    %s32 = sadd.s32 %s31, 1
    %s33 = scalar_select %p30, %s31, %s32
    %p36 = pneg %p30
    %p37 = scmp.eq.s32.totalorder %s21, 1
    %p38 = por %p36, %p37
    %p39 = scmp.ne.s32.totalorder %s31, %s34
    %p40 = scmp.eq.s32.totalorder %s21, 0
    %p41 = por %p39, %p40
    %p42 = scmp.ne.s32.totalorder %s31, %s34
    %p43 = scmp.eq.s32.totalorder %s26, 1
    %p44 = por %p42, %p43
    %p45 = scmp.ne.s32.totalorder %s34, %s35
    %p46 = scmp.eq.s32.totalorder %s26, 0
    %p47 = por %p45, %p46
    %p48 = scmp.ne.s32.totalorder %s34, %s35
    %p49 = scmp.eq.s32.totalorder %s27, 1
    %p50 = por %p48, %p49
    %p52 = scmp.ne.s32.totalorder %s35, %s51
    %p53 = scmp.eq.s32.totalorder %s27, 0
    %p54 = por %p52, %p53
    %s55 = ssub.s32 %s21, %s28
    %p56 = scmp.eq.s32.totalorder %s55, 0
    %s58 = sadd.s32 %s57, 1
    %s59 = scalar_select %p56, %s57, %s58
    %p62 = pneg %p56
    %p63 = scmp.eq.s32.totalorder %s21, 1
    %p64 = por %p62, %p63
    %p65 = scmp.ne.s32.totalorder %s57, %s60
    %p66 = scmp.eq.s32.totalorder %s21, 0
    %p67 = por %p65, %p66
    %p68 = scmp.ne.s32.totalorder %s57, %s60
    %p69 = scmp.eq.s32.totalorder %s26, 1
    %p70 = por %p68, %p69
    %p71 = scmp.ne.s32.totalorder %s60, %s61
    %p72 = scmp.eq.s32.totalorder %s26, 0
    %p73 = por %p71, %p72
    %p74 = scmp.ne.s32.totalorder %s60, %s61
    %p75 = scmp.eq.s32.totalorder %s27, 1
    %p76 = por %p74, %p75
    %p78 = scmp.ne.s32.totalorder %s61, %s77
    %p79 = scmp.eq.s32.totalorder %s27, 0
    %p80 = por %p78, %p79
    %s81 = ssub.s32 %s21, %s28
    %p82 = scmp.eq.s32.totalorder %s81, 0
    %s84 = sadd.s32 %s83, 1
    %s85 = scalar_select %p82, %s83, %s84
    %p88 = pneg %p82
    %p89 = scmp.eq.s32.totalorder %s21, 1
    %p90 = por %p88, %p89
    %p91 = scmp.ne.s32.totalorder %s83, %s86
    %p92 = scmp.eq.s32.totalorder %s21, 0
    %p93 = por %p91, %p92
    %p94 = scmp.ne.s32.totalorder %s83, %s86
    %p95 = scmp.eq.s32.totalorder %s26, 1
    %p96 = por %p94, %p95
    %p97 = scmp.ne.s32.totalorder %s86, %s87
    %p98 = scmp.eq.s32.totalorder %s26, 0
    %p99 = por %p97, %p98
    %p100 = scmp.ne.s32.totalorder %s86, %s87
    %p101 = scmp.eq.s32.totalorder %s27, 1
    %p102 = por %p100, %p101
    %p104 = scmp.ne.s32.totalorder %s87, %s103
    %p105 = scmp.eq.s32.totalorder %s27, 0
    %p106 = por %p104, %p105
    %s108 = sadd.s32 %s107, 1
    %p111 = scmp.eq.s32.totalorder %s21, 1
    %p112 = scmp.ne.s32.totalorder %s107, %s109
    %p113 = scmp.eq.s32.totalorder %s21, 0
    %p114 = por %p112, %p113
    %p115 = scmp.ne.s32.totalorder %s107, %s109
    %p116 = scmp.eq.s32.totalorder %s26, 1
    %p117 = por %p115, %p116
    %p118 = scmp.ne.s32.totalorder %s109, %s110
    %p119 = scmp.eq.s32.totalorder %s26, 0
    %p120 = por %p118, %p119
    %p121 = scmp.ne.s32.totalorder %s109, %s110
    %p122 = scmp.eq.s32.totalorder %s27, 1
    %p123 = por %p121, %p122
    %p125 = scmp.ne.s32.totalorder %s110, %s124
    %p126 = scmp.eq.s32.totalorder %s27, 0
    %p127 = por %p125, %p126
    %s129 = sadd.s32 %s128, 1
    %p132 = scmp.eq.s32.totalorder %s21, 1
    %p133 = scmp.ne.s32.totalorder %s128, %s130
    %p134 = scmp.eq.s32.totalorder %s21, 0
    %p135 = por %p133, %p134
    %p136 = scmp.ne.s32.totalorder %s128, %s130
    %p137 = scmp.eq.s32.totalorder %s26, 1
    %p138 = por %p136, %p137
    %p139 = scmp.ne.s32.totalorder %s130, %s131
    %p140 = scmp.eq.s32.totalorder %s26, 0
    %p141 = por %p139, %p140
    %p142 = scmp.ne.s32.totalorder %s130, %s131
    %p143 = scmp.eq.s32.totalorder %s27, 1
    %p144 = por %p142, %p143
    %p146 = scmp.ne.s32.totalorder %s131, %s145
    %p147 = scmp.eq.s32.totalorder %s27, 0
    %p148 = por %p146, %p147
    %s150 = sadd.s32 %s149, 1
    %p153 = scmp.eq.s32.totalorder %s21, 1
    %p154 = scmp.ne.s32.totalorder %s149, %s151
    %p155 = scmp.eq.s32.totalorder %s21, 0
    %p156 = por %p154, %p155
    %p157 = scmp.ne.s32.totalorder %s149, %s151
    %p158 = scmp.eq.s32.totalorder %s26, 1
    %p159 = por %p157, %p158
    %p160 = scmp.ne.s32.totalorder %s151, %s152
    %p161 = scmp.eq.s32.totalorder %s26, 0
    %p162 = por %p160, %p161
    %p163 = scmp.ne.s32.totalorder %s151, %s152
    %p164 = scmp.eq.s32.totalorder %s27, 1
    %p165 = por %p163, %p164
    %p167 = scmp.ne.s32.totalorder %s152, %s166
    %p168 = scmp.eq.s32.totalorder %s27, 0
    %p169 = por %p167, %p168
    %s171 = sadd.s32 %s170, 1
    %p174 = scmp.eq.s32.totalorder %s21, 1
    %p175 = scmp.ne.s32.totalorder %s170, %s172
    %p176 = scmp.eq.s32.totalorder %s21, 0
    %p177 = por %p175, %p176
    %p178 = scmp.ne.s32.totalorder %s170, %s172
    %p179 = scmp.eq.s32.totalorder %s26, 1
    %p180 = por %p178, %p179
    %p181 = scmp.ne.s32.totalorder %s172, %s173
    %p182 = scmp.eq.s32.totalorder %s26, 0
    %p183 = por %p181, %p182
    %p184 = scmp.ne.s32.totalorder %s172, %s173
    %p185 = scmp.eq.s32.totalorder %s27, 1
    %p186 = por %p184, %p185
    %p188 = scmp.ne.s32.totalorder %s173, %s187
    %p189 = scmp.eq.s32.totalorder %s27, 0
    %p190 = por %p188, %p189
    %s192 = sadd.s32 %s191, 1
    %p195 = scmp.eq.s32.totalorder %s21, 1
    %p196 = scmp.ne.s32.totalorder %s191, %s193
    %p197 = scmp.eq.s32.totalorder %s21, 0
    %p198 = por %p196, %p197
    %p199 = scmp.ne.s32.totalorder %s191, %s193
    %p200 = scmp.eq.s32.totalorder %s26, 1
    %p201 = por %p199, %p200
    %p202 = scmp.ne.s32.totalorder %s193, %s194
    %p203 = scmp.eq.s32.totalorder %s26, 0
    %p204 = por %p202, %p203
    %p205 = scmp.ne.s32.totalorder %s193, %s194
    %p206 = scmp.eq.s32.totalorder %s27, 1
    %p207 = por %p205, %p206
    %p209 = scmp.ne.s32.totalorder %s194, %s208
    %p210 = scmp.eq.s32.totalorder %s27, 0
    %p211 = por %p209, %p210
    %s213 = sadd.s32 %s212, 1
    %p216 = scmp.eq.s32.totalorder %s21, 1
    %p217 = scmp.ne.s32.totalorder %s212, %s214
    %p218 = scmp.eq.s32.totalorder %s21, 0
    %p219 = por %p217, %p218
    %p220 = scmp.ne.s32.totalorder %s212, %s214
    %p221 = scmp.eq.s32.totalorder %s26, 1
    %p222 = por %p220, %p221
    %p223 = scmp.ne.s32.totalorder %s214, %s215
    %p224 = scmp.eq.s32.totalorder %s26, 0
    %p225 = por %p223, %p224
    %p226 = scmp.ne.s32.totalorder %s214, %s215
    %p227 = scmp.eq.s32.totalorder %s27, 1
    %p228 = por %p226, %p227
    %p230 = scmp.ne.s32.totalorder %s215, %s229
    %p231 = scmp.eq.s32.totalorder %s27, 0
    %p232 = por %p230, %p231
    %s234 = sadd.s32 %s233, 1
    %p237 = scmp.eq.s32.totalorder %s21, 1
    %p238 = scmp.ne.s32.totalorder %s233, %s235
    %p239 = scmp.eq.s32.totalorder %s21, 0
    %p240 = por %p238, %p239
    %p241 = scmp.ne.s32.totalorder %s233, %s235
    %p242 = scmp.eq.s32.totalorder %s26, 1
    %p243 = por %p241, %p242
    %p244 = scmp.ne.s32.totalorder %s235, %s236
    %p245 = scmp.eq.s32.totalorder %s26, 0
    %p246 = por %p244, %p245
    %p247 = scmp.ne.s32.totalorder %s235, %s236
    %p248 = scmp.eq.s32.totalorder %s27, 1
    %p249 = por %p247, %p248
    %p251 = scmp.ne.s32.totalorder %s236, %s250
    %p252 = scmp.eq.s32.totalorder %s27, 0
    %p253 = por %p251, %p252
    %s255 = sadd.s32 %s254, 1
    %p258 = scmp.eq.s32.totalorder %s21, 1
    %p259 = scmp.ne.s32.totalorder %s254, %s256
    %p260 = scmp.eq.s32.totalorder %s21, 0
    %p261 = por %p259, %p260
    %p262 = scmp.ne.s32.totalorder %s254, %s256
    %p263 = scmp.eq.s32.totalorder %s26, 1
    %p264 = por %p262, %p263
    %p265 = scmp.ne.s32.totalorder %s256, %s257
    %p266 = scmp.eq.s32.totalorder %s26, 0
    %p267 = por %p265, %p266
    %p268 = scmp.ne.s32.totalorder %s256, %s257
    %p269 = scmp.eq.s32.totalorder %s27, 1
    %p270 = por %p268, %p269
    %p272 = scmp.ne.s32.totalorder %s257, %s271
    %p273 = scmp.eq.s32.totalorder %s27, 0
    %p274 = por %p272, %p273
    %s276 = sadd.s32 %s275, 1
    %p279 = scmp.eq.s32.totalorder %s21, 1
    %p280 = scmp.ne.s32.totalorder %s275, %s277
    %p281 = scmp.eq.s32.totalorder %s21, 0
    %p282 = por %p280, %p281
    %p283 = scmp.ne.s32.totalorder %s275, %s277
    %p284 = scmp.eq.s32.totalorder %s26, 1
    %p285 = por %p283, %p284
    %p286 = scmp.ne.s32.totalorder %s277, %s278
    %p287 = scmp.eq.s32.totalorder %s26, 0
    %p288 = por %p286, %p287
    %p289 = scmp.ne.s32.totalorder %s277, %s278
    %p290 = scmp.eq.s32.totalorder %s27, 1
    %p291 = por %p289, %p290
    %p293 = scmp.ne.s32.totalorder %s278, %s292
    %p294 = scmp.eq.s32.totalorder %s27, 0
    %p295 = por %p293, %p294
    %s297 = sadd.s32 %s296, 1
    %p300 = scmp.eq.s32.totalorder %s21, 1
    %p301 = scmp.ne.s32.totalorder %s296, %s298
    %p302 = scmp.eq.s32.totalorder %s21, 0
    %p303 = por %p301, %p302
    %p304 = scmp.ne.s32.totalorder %s296, %s298
    %p305 = scmp.eq.s32.totalorder %s26, 1
    %p306 = por %p304, %p305
    %p307 = scmp.ne.s32.totalorder %s298, %s299
    %p308 = scmp.eq.s32.totalorder %s26, 0
    %p309 = por %p307, %p308
    %p310 = scmp.ne.s32.totalorder %s298, %s299
    %p311 = scmp.eq.s32.totalorder %s27, 1
    %p312 = por %p310, %p311
    %p314 = scmp.ne.s32.totalorder %s299, %s313
    %p315 = scmp.eq.s32.totalorder %s27, 0
    %p316 = por %p314, %p315
    %s318 = sadd.s32 %s317, 1
    %p321 = scmp.eq.s32.totalorder %s21, 1
    %p322 = scmp.ne.s32.totalorder %s317, %s319
    %p323 = scmp.eq.s32.totalorder %s21, 0
    %p324 = por %p322, %p323
    %p325 = scmp.ne.s32.totalorder %s317, %s319
    %p326 = scmp.eq.s32.totalorder %s26, 1
    %p327 = por %p325, %p326
    %p328 = scmp.ne.s32.totalorder %s319, %s320
    %p329 = scmp.eq.s32.totalorder %s26, 0
    %p330 = por %p328, %p329
    %p331 = scmp.ne.s32.totalorder %s319, %s320
    %p332 = scmp.eq.s32.totalorder %s27, 1
    %p333 = por %p331, %p332
    %p335 = scmp.ne.s32.totalorder %s320, %s334
    %p336 = scmp.eq.s32.totalorder %s27, 0
    %p337 = por %p335, %p336
    %s339 = sadd.s32 %s338, 1
    %p342 = scmp.eq.s32.totalorder %s21, 1
    %p343 = scmp.ne.s32.totalorder %s338, %s340
    %p344 = scmp.eq.s32.totalorder %s21, 0
    %p345 = por %p343, %p344
    %p346 = scmp.ne.s32.totalorder %s338, %s340
    %p347 = scmp.eq.s32.totalorder %s26, 1
    %p348 = por %p346, %p347
    %p349 = scmp.ne.s32.totalorder %s340, %s341
    %p350 = scmp.eq.s32.totalorder %s26, 0
    %p351 = por %p349, %p350
    %p352 = scmp.ne.s32.totalorder %s340, %s341
    %p353 = scmp.eq.s32.totalorder %s27, 1
    %p354 = por %p352, %p353
    %p356 = scmp.ne.s32.totalorder %s341, %s355
    %p357 = scmp.eq.s32.totalorder %s27, 0
    %p358 = por %p356, %p357
    %s359 = ssub.s32 %s21, %s28
    %p360 = scmp.eq.s32.totalorder %s359, 0
    %s362 = sadd.s32 %s361, 1
    %s363 = scalar_select %p360, %s361, %s362
    %p366 = pneg %p360
    %p367 = scmp.eq.s32.totalorder %s21, 1
    %p368 = por %p366, %p367
    %p369 = scmp.ne.s32.totalorder %s361, %s364
    %p370 = scmp.eq.s32.totalorder %s21, 0
    %p371 = por %p369, %p370
    %p372 = scmp.ne.s32.totalorder %s361, %s364
    %p373 = scmp.eq.s32.totalorder %s26, 1
    %p374 = por %p372, %p373
    %p375 = scmp.ne.s32.totalorder %s364, %s365
    %p376 = scmp.eq.s32.totalorder %s26, 0
    %p377 = por %p375, %p376
    %p378 = scmp.ne.s32.totalorder %s364, %s365
    %p379 = scmp.eq.s32.totalorder %s27, 1
    %p380 = por %p378, %p379
    %p382 = scmp.ne.s32.totalorder %s365, %s381
    %p383 = scmp.eq.s32.totalorder %s27, 0
    %p384 = por %p382, %p383
    %p385 = scmp.le.s32.totalorder 1, %s21
    %p386 = scmp.lt.s32.totalorder %s21, 3
    %p387 = pnand %p385, %p386
    %p388 = pneg %p387
    // Predicated region
    $region9: #{cmr_forward.3} parent=5 // pred_check
      _
    $region10: #{cmr_forward.3} parent=5 // pred_check_branch
      %390 = sbr.rel (%p387) target = $region12
    $region11: #{cmr_forward.3} parent=5 // pred_region
      %s391 = ssub.s32 %s21, 1
      // Predicated region
      $region13: #{cmr_forward.3} parent=11 // pred_check
        %p392 = pneg %p120
      $region14: #{cmr_forward.3} parent=11 // pred_check_branch
        %394 = sbr.rel (%p392) target = $region16
      $region15: #{cmr_forward.3} parent=11 // pred_region
        _
      $region16: #{cmr_forward.3} parent=11 // pred_fallthru
        _
      // Predicated region
      $region17: #{cmr_forward.3} parent=11 // pred_check
        %p395 = pneg %p141
      $region18: #{cmr_forward.3} parent=11 // pred_check_branch
        %397 = sbr.rel (%p395) target = $region20
      $region19: #{cmr_forward.3} parent=11 // pred_region
        _
      $region20: #{cmr_forward.3} parent=11 // pred_fallthru
        _
      // Predicated region
      $region21: #{cmr_forward.3} parent=11 // pred_check
        %p398 = pneg %p162
      $region22: #{cmr_forward.3} parent=11 // pred_check_branch
        %400 = sbr.rel (%p398) target = $region24
      $region23: #{cmr_forward.3} parent=11 // pred_region
        _
      $region24: #{cmr_forward.3} parent=11 // pred_fallthru
        _
      // Predicated region
      $region25: #{cmr_forward.3} parent=11 // pred_check
        %p401 = pneg %p183
      $region26: #{cmr_forward.3} parent=11 // pred_check_branch
        %403 = sbr.rel (%p401) target = $region28
      $region27: #{cmr_forward.3} parent=11 // pred_region
        _
      $region28: #{cmr_forward.3} parent=11 // pred_fallthru
        _
      // Predicated region
      $region29: #{cmr_forward.3} parent=11 // pred_check
        %p404 = pneg %p204
      $region30: #{cmr_forward.3} parent=11 // pred_check_branch
        %406 = sbr.rel (%p404) target = $region32
      $region31: #{cmr_forward.3} parent=11 // pred_region
        _
      $region32: #{cmr_forward.3} parent=11 // pred_fallthru
        _
      // Predicated region
      $region33: #{cmr_forward.3} parent=11 // pred_check
        %p407 = pneg %p225
      $region34: #{cmr_forward.3} parent=11 // pred_check_branch
        %409 = sbr.rel (%p407) target = $region36
      $region35: #{cmr_forward.3} parent=11 // pred_region
        _
      $region36: #{cmr_forward.3} parent=11 // pred_fallthru
        _
      // Predicated region
      $region37: #{cmr_forward.3} parent=11 // pred_check
        %p410 = pneg %p246
      $region38: #{cmr_forward.3} parent=11 // pred_check_branch
        %412 = sbr.rel (%p410) target = $region40
      $region39: #{cmr_forward.3} parent=11 // pred_region
        _
      $region40: #{cmr_forward.3} parent=11 // pred_fallthru
        _
      // Predicated region
      $region41: #{cmr_forward.3} parent=11 // pred_check
        %p413 = pneg %p267
      $region42: #{cmr_forward.3} parent=11 // pred_check_branch
        %415 = sbr.rel (%p413) target = $region44
      $region43: #{cmr_forward.3} parent=11 // pred_region
        _
      $region44: #{cmr_forward.3} parent=11 // pred_fallthru
        _
      // Predicated region
      $region45: #{cmr_forward.3} parent=11 // pred_check
        %p416 = pneg %p288
      $region46: #{cmr_forward.3} parent=11 // pred_check_branch
        %418 = sbr.rel (%p416) target = $region48
      $region47: #{cmr_forward.3} parent=11 // pred_region
        _
      $region48: #{cmr_forward.3} parent=11 // pred_fallthru
        _
      // Predicated region
      $region49: #{cmr_forward.3} parent=11 // pred_check
        %p419 = pneg %p309
      $region50: #{cmr_forward.3} parent=11 // pred_check_branch
        %421 = sbr.rel (%p419) target = $region52
      $region51: #{cmr_forward.3} parent=11 // pred_region
        _
      $region52: #{cmr_forward.3} parent=11 // pred_fallthru
        _
      // Predicated region
      $region53: #{cmr_forward.3} parent=11 // pred_check
        %p422 = pneg %p330
      $region54: #{cmr_forward.3} parent=11 // pred_check_branch
        %424 = sbr.rel (%p422) target = $region56
      $region55: #{cmr_forward.3} parent=11 // pred_region
        _
      $region56: #{cmr_forward.3} parent=11 // pred_fallthru
        _
      // Predicated region
      $region57: #{cmr_forward.3} parent=11 // pred_check
        %p425 = pneg %p351
      $region58: #{cmr_forward.3} parent=11 // pred_check_branch
        %427 = sbr.rel (%p425) target = $region60
      $region59: #{cmr_forward.3} parent=11 // pred_region
        _
      $region60: #{cmr_forward.3} parent=11 // pred_fallthru
        _
    $region12: #{cmr_forward.3} parent=5 // pred_fallthru
      _
    %p428 = scmp.lt.s32.totalorder %s21, 2
    // Predicated region
    $region61: #{cmr_forward.3} parent=5 // pred_check
      %p429 = pneg %p428
    $region62: #{cmr_forward.3} parent=5 // pred_check_branch
      %431 = sbr.rel (%p429) target = $region64
    $region63: #{cmr_forward.3} parent=5 // pred_region
      // Predicated region
      $region65: #{cmr_forward.3} parent=63 // pred_check
        %p432 = pneg %p41
      $region66: #{cmr_forward.3} parent=63 // pred_check_branch
        %434 = sbr.rel (%p432) target = $region68
      $region67: #{cmr_forward.3} parent=63 // pred_region
        %p435 = scmp.lt.s32.totalorder %s21, 1
        %s436 = scalar_select %p435, %s21, 1
        %s437 = smul.addr %s436, 4
        %s438 = scalar_lea.vmem %s0, %s437
      $region68: #{cmr_forward.3} parent=63 // pred_fallthru
        _
      // Predicated region
      $region69: #{cmr_forward.3} parent=63 // pred_check
        %p439 = pneg %p67
      $region70: #{cmr_forward.3} parent=63 // pred_check_branch
        %441 = sbr.rel (%p439) target = $region72
      $region71: #{cmr_forward.3} parent=63 // pred_region
        %p442 = scmp.lt.s32.totalorder %s21, 1
        %s443 = scalar_select %p442, %s21, 1
        %s444 = smul.addr %s443, 4
        %s445 = smul.addr %s444, 8
        %s446 = scalar_lea.vmem %s1, %s445
      $region72: #{cmr_forward.3} parent=63 // pred_fallthru
        _
      // Predicated region
      $region73: #{cmr_forward.3} parent=63 // pred_check
        %p447 = pneg %p93
      $region74: #{cmr_forward.3} parent=63 // pred_check_branch
        %449 = sbr.rel (%p447) target = $region76
      $region75: #{cmr_forward.3} parent=63 // pred_region
        %p450 = scmp.lt.s32.totalorder %s21, 1
        %s451 = scalar_select %p450, %s21, 1
        %s452 = smul.addr %s451, 2
        %s453 = smul.addr %s452, 8
        %s454 = scalar_lea.vmem %s2, %s453
      $region76: #{cmr_forward.3} parent=63 // pred_fallthru
        _
    $region64: #{cmr_forward.3} parent=5 // pred_fallthru
      _
    %p455 = scmp.le.s32.totalorder 1, %s21
    %p456 = scmp.lt.s32.totalorder %s21, 3
    %p457 = pnand %p455, %p456
    %p458 = pneg %p457
    // Predicated region
    $region77: #{cmr_forward.3} parent=5 // pred_check
      _
    $region78: #{cmr_forward.3} parent=5 // pred_check_branch
      %460 = sbr.rel (%p457) target = $region80
    $region79: #{cmr_forward.3} parent=5 // pred_region
      %s461 = ssub.s32 %s21, 1
      %p462 = scmp.lt.s32.totalorder %s26, 1
      %s463 = scalar_select %p462, %s26, 1
      %s464 = smul.addr %s463, 4
      %s465 = scalar_lea.vmem %s0, %s464
      %p466 = pneg %p47
      %p467 = pneg %p44
      %p468 = scmp.lt.s32.totalorder %s26, 1
      %s469 = scalar_select %p468, %s26, 1
      %s470 = smul.addr %s469, 4
      %s471 = smul.addr %s470, 8
      %s472 = scalar_lea.vmem %s1, %s471
      %p473 = pneg %p73
      %p474 = pneg %p70
      %p475 = scmp.lt.s32.totalorder %s26, 1
      %s476 = scalar_select %p475, %s26, 1
      %s477 = smul.addr %s476, 2
      %s478 = smul.addr %s477, 8
      %s479 = scalar_lea.vmem %s2, %s478
      %p480 = pneg %p99
      %p481 = pneg %p96
      %p482 = pneg %p120
      %p483 = pneg %p117
      %p484 = pneg %p141
      %p485 = pneg %p138
      %p486 = pneg %p162
      %p487 = pneg %p159
      %p488 = pneg %p183
      %p489 = pneg %p180
      %p490 = pneg %p204
      %p491 = pneg %p201
      %p492 = pneg %p225
      %p493 = pneg %p222
      %p494 = pneg %p246
      %p495 = pneg %p243
      %p496 = pneg %p267
      %p497 = pneg %p264
      %p498 = pneg %p288
      %p499 = pneg %p285
      %p500 = pneg %p309
      %p501 = pneg %p306
      %p502 = pneg %p330
      %p503 = pneg %p327
      %p504 = pneg %p351
      %p505 = pneg %p348
      %p506 = pneg %p377
      %p507 = pneg %p374
      %p508 = scmp.lt.s32.totalorder %s26, 1
      %s509 = scalar_select %p508, %s26, 1
      %s510 = smul.addr %s509, 4
      %s511 = scalar_lea.vmem %s15, %s510
      %p512 = scmp.lt.s32.totalorder %s26, 1
      %s513 = scalar_select %p512, %s26, 1
      %s514 = smul.addr %s513, 4
      %s515 = scalar_lea.vmem %s0, %s514
      %p516 = scmp.lt.s32.totalorder %s26, 1
      %s517 = scalar_select %p516, %s26, 1
      %s518 = smul.addr %s517, 4
      %s519 = smul.addr %s518, 8
      %s520 = scalar_lea.vmem %s1, %s519
      %p521 = scmp.lt.s32.totalorder %s26, 1
      %s522 = scalar_select %p521, %s26, 1
      %s523 = smul.addr %s522, 2
      %s524 = smul.addr %s523, 8
      %s525 = scalar_lea.vmem %s2, %s524
      %p526 = scmp.lt.s32.totalorder %s26, 1
      %s527 = scalar_select %p526, %s26, 1
      %s528 = smul.addr %s527, 4
      %s529 = scalar_lea.vmem %s15, %s528
      %v531 = vld [vmem:[%s515] sm:$0x7]
      %v532 = vld [vmem:[%s3] sm:$0xf]
      %v533 = vld [vmem:[%s3 + $0x4] sm:$0xf]
      %v534 = vld [vmem:[%s3 + $0x8] sm:$0xf]
      %v535 = vld [vmem:[%s3 + $0xc] sm:$0xf]
      %v536 = vld [vmem:[%s3 + $0x10] sm:$0xf]
      %v537 = vld [vmem:[%s3 + $0x14] sm:$0xf]
      %v538 = vld [vmem:[%s3 + $0x18] sm:$0xf]
      %v539 = vld [vmem:[%s3 + $0x1c] sm:$0xf]
      %v540 = vpack.c.bf16 %v531, %v531
      %v549 = vunpack.c.l.b16 %v532
      %v550 = vunpack.c.l.b16 %v533
      %v551 = vunpack.c.l.b16 %v534
      %v552 = vunpack.c.l.b16 %v535
      %v553 = vunpack.c.l.b16 %v536
      %v554 = vunpack.c.l.b16 %v537
      %v555 = vunpack.c.l.b16 %v538
      %v556 = vunpack.c.l.b16 %v539
      %v557 = vpack.c.b16 %v550, %v549
      %v558 = vpack.c.b16 %v552, %v551
      %v559 = vpack.c.b16 %v554, %v553
      %v560 = vpack.c.b16 %v556, %v555
      %vm565 = vcmask 523264
      %v567 = vsel %vm565, %v540, 0
      %569 = vmatprep.subr.bf16.mxu0 0
      %570 = vmatpush1.bf16.msra.mxu0 0
      %571 = vmatprep.subr.bf16.mxu0 0
      %572 = vmatpush1.bf16.msra.mxu0 0
      %573 = vmatprep.subr.bf16.mxu0 0
      %574 = vmatpush1.bf16.msra.mxu0 0
      %575 = vmatprep.subr.bf16.mxu0 0
      %576 = vmatpush1.bf16.msra.mxu0 0
      %577 = vmatprep.subr.bf16.mxu0 0
      %578 = vmatpush1.bf16.msra.mxu0 %v560
      %579 = vmatprep.subr.bf16.mxu0 0
      %580 = vmatpush1.bf16.msra.mxu0 %v559
      %581 = vmatprep.subr.bf16.mxu0 0
      %582 = vmatpush1.bf16.msra.mxu0 %v558
      %583 = vmatprep.subr.bf16.mxu0 0
      %584 = vmatpush1.bf16.msra.mxu0 %v557
      %585 = vmatprep.subr.bf16.mxu0 0
      %586 = vmatpush2.bf16.msra.mxu0 0
      %587 = vmatprep.subr.bf16.mxu0 0
      %588 = vmatpush2.bf16.msra.mxu0 0
      %589 = vmatprep.subr.bf16.mxu0 0
      %590 = vmatpush2.bf16.msra.mxu0 0
      %591 = vmatprep.subr.bf16.mxu0 0
      %592 = vmatpush2.bf16.msra.mxu0 0
      %593 = vmatprep.subr.bf16.mxu0 0
      %594 = vmatpush2.bf16.msra.mxu0 0
      %595 = vmatprep.subr.bf16.mxu0 0
      %596 = vmatpush2.bf16.msra.mxu0 0
      %597 = vmatprep.subr.bf16.mxu0 0
      %598 = vmatpush2.bf16.msra.mxu0 0
      %599 = vmatprep.subr.bf16.mxu0 0
      %600 = vmatpush2.bf16.msra.mxu0 0
      %601 = vmatprep.mubr.bf16.mxu0 0
      %602 = vmatmul.mubr.bf16.gmra.mxu0 %v567
      %v603 = vpop.f32.mrf.mxu0
      %v604 = vadd.f32 0.0, %v603
      %v605 = vpop.f32.mrf.mxu0
      %v606 = vpop.f32.mrf.mxu0
      %v607 = vpop.f32.mrf.mxu0
      %608 = vdwg.mxu0
      %v609 = vld [vmem:[%s525] sm:$0xff]
      %v610 = vld [vmem:[%s525 + $0x8] sm:$0xff]
      %v611 = vld [vmem:[%s5] sm:$0xf]
      %v612 = vld [vmem:[%s5 + $0x4] sm:$0xf]
      %v613 = vpack.c.bf16 %v610, %v609
      %v616 = vunpack.c.l.b16 %v611
      %v617 = vunpack.c.l.b16 %v612
      %v618 = vpack.c.b16 %v617, %v616
      %vm620 = vcmask 130048
      %v622 = vsel %vm620, %v613, 0
      %624 = vmatprep.subr.bf16.mxu0 0
      %625 = vmatpush1.bf16.msra.mxu0 0
      %626 = vmatprep.subr.bf16.mxu0 0
      %627 = vmatpush1.bf16.msra.mxu0 0
      %628 = vmatprep.subr.bf16.mxu0 0
      %629 = vmatpush1.bf16.msra.mxu0 0
      %630 = vmatprep.subr.bf16.mxu0 0
      %631 = vmatpush1.bf16.msra.mxu0 0
      %632 = vmatprep.subr.bf16.mxu0 0
      %633 = vmatpush1.bf16.msra.mxu0 0
      %634 = vmatprep.subr.bf16.mxu0 0
      %635 = vmatpush1.bf16.msra.mxu0 0
      %636 = vmatprep.subr.bf16.mxu0 0
      %637 = vmatpush1.bf16.msra.mxu0 0
      %638 = vmatprep.subr.bf16.mxu0 0
      %639 = vmatpush1.bf16.msra.mxu0 %v618
      %640 = vmatprep.subr.bf16.mxu0 0
      %641 = vmatpush2.bf16.msra.mxu0 0
      %642 = vmatprep.subr.bf16.mxu0 0
      %643 = vmatpush2.bf16.msra.mxu0 0
      %644 = vmatprep.subr.bf16.mxu0 0
      %645 = vmatpush2.bf16.msra.mxu0 0
      %646 = vmatprep.subr.bf16.mxu0 0
      %647 = vmatpush2.bf16.msra.mxu0 0
      %648 = vmatprep.subr.bf16.mxu0 0
      %649 = vmatpush2.bf16.msra.mxu0 0
      %650 = vmatprep.subr.bf16.mxu0 0
      %651 = vmatpush2.bf16.msra.mxu0 0
      %652 = vmatprep.subr.bf16.mxu0 0
      %653 = vmatpush2.bf16.msra.mxu0 0
      %654 = vmatprep.subr.bf16.mxu0 0
      %655 = vmatpush2.bf16.msra.mxu0 0
      %656 = vmatprep.mubr.bf16.mxu0 0
      %657 = vmatmul.mubr.bf16.gmra.mxu0 %v622
      %v658 = vpop.f32.mrf.mxu0
      %v659 = vadd.f32 0.0, %v658
      %v660 = vpop.f32.mrf.mxu0
      %v661 = vpop.f32.mrf.mxu0
      %v662 = vadd.f32 0.0, %v661
      %v663 = vpop.f32.mrf.mxu0
      %664 = vdwg.mxu0
      %v665 = vld [vmem:[%s7] sm:$0xf]
      %v666 = vld [vmem:[%s7 + $0x4] sm:$0xf]
      %v667 = vld [vmem:[%s7 + $0x8] sm:$0xf]
      %v668 = vld [vmem:[%s7 + $0xc] sm:$0xf]
      %v669 = vpack.c.bf16 %v604, %v604
      %v670 = vld [vmem:[%s8] sm:$0xf]
      %v671 = vld [vmem:[%s8 + $0x4] sm:$0xf]
      %v672 = vld [vmem:[%s8 + $0x8] sm:$0xf]
      %v673 = vld [vmem:[%s8 + $0xc] sm:$0xf]
      %v674 = vpack.c.bf16 %v662, %v659
      %v679 = vunpack.c.l.b16 %v670
      %v680 = vunpack.c.l.b16 %v671
      %v681 = vunpack.c.l.b16 %v672
      %v682 = vunpack.c.l.b16 %v673
      %v683 = vpack.c.b16 %v680, %v679
      %v684 = vpack.c.b16 %v682, %v681
      %v686 = vsel %vm620, %v683, 0
      %v689 = vsel %vm620, %v684, 0
      %691 = vmatprep.subr.bf16.mxu0 0
      %692 = vmatpush1.bf16.msra.mxu0 0
      %693 = vmatprep.subr.bf16.mxu0 0
      %694 = vmatpush1.bf16.msra.mxu0 0
      %695 = vmatprep.subr.bf16.mxu0 0
      %696 = vmatpush1.bf16.msra.mxu0 0
      %697 = vmatprep.subr.bf16.mxu0 0
      %698 = vmatpush1.bf16.msra.mxu0 0
      %699 = vmatprep.subr.bf16.mxu0 0
      %700 = vmatpush1.bf16.msra.mxu0 0
      %701 = vmatprep.subr.bf16.mxu0 0
      %702 = vmatpush1.bf16.msra.mxu0 0
      %703 = vmatprep.subr.bf16.mxu0 0
      %704 = vmatpush1.bf16.msra.mxu0 0
      %705 = vmatprep.subr.bf16.mxu0 0
      %706 = vmatpush1.bf16.msra.mxu0 %v674
      %707 = vmatprep.subr.bf16.mxu0 0
      %708 = vmatpush2.bf16.msra.mxu0 0
      %709 = vmatprep.subr.bf16.mxu0 0
      %710 = vmatpush2.bf16.msra.mxu0 0
      %711 = vmatprep.subr.bf16.mxu0 0
      %712 = vmatpush2.bf16.msra.mxu0 0
      %713 = vmatprep.subr.bf16.mxu0 0
      %714 = vmatpush2.bf16.msra.mxu0 0
      %715 = vmatprep.subr.bf16.mxu0 0
      %716 = vmatpush2.bf16.msra.mxu0 0
      %717 = vmatprep.subr.bf16.mxu0 0
      %718 = vmatpush2.bf16.msra.mxu0 0
      %719 = vmatprep.subr.bf16.mxu0 0
      %720 = vmatpush2.bf16.msra.mxu0 0
      %721 = vmatprep.subr.bf16.mxu0 0
      %722 = vmatpush2.bf16.msra.mxu0 0
      %723 = vmatprep.mubr.bf16.mxu0 0
      %724 = vmatmul.mubr.bf16.gmra.mxu0 %v686
      %v725 = vpop.f32.mrf.mxu0
      %v726 = vadd.f32 0.0, %v725
      %v727 = vpop.f32.mrf.mxu0
      %v728 = vpop.f32.mrf.mxu0
      %v729 = vadd.f32 0.0, %v728
      %v730 = vpop.f32.mrf.mxu0
      %731 = vmatprep.mubr.bf16.mxu0 0
      %732 = vmatmul.mubr.bf16.gmra.mxu0 %v689
      %v733 = vpop.f32.mrf.mxu0
      %v734 = vadd.f32 0.0, %v733
      %v735 = vpop.f32.mrf.mxu0
      %v736 = vpop.f32.mrf.mxu0
      %v737 = vadd.f32 0.0, %v736
      %v738 = vpop.f32.mrf.mxu0
      %739 = vdwg.mxu0
      %v744 = vunpack.c.l.b16 %v665
      %v745 = vunpack.c.l.b16 %v666
      %v746 = vunpack.c.l.b16 %v667
      %v747 = vunpack.c.l.b16 %v668
      %v748 = vpack.c.b16 %v745, %v744
      %v749 = vpack.c.b16 %v747, %v746
      %vm750 = vcmask 23552
      %v752 = vsel %vm750, %v748, 0
      %v755 = vsel %vm750, %v749, 0
      %vm757 = vcmask 1040384
      %vm758 = vcmask 1041408
      %v759 = vsel %vm757, 4294967295, 65535
      %v760 = vsel %vm758, %v759, 0
      %v762 = vand.u32 %v669, %v760
      %764 = vmatprep.subr.bf16.mxu0 0
      %765 = vmatpush1.bf16.msra.mxu0 0
      %766 = vmatprep.subr.bf16.mxu0 0
      %767 = vmatpush1.bf16.msra.mxu0 0
      %768 = vmatprep.subr.bf16.mxu0 0
      %769 = vmatpush1.bf16.msra.mxu0 0
      %770 = vmatprep.subr.bf16.mxu0 0
      %771 = vmatpush1.bf16.msra.mxu0 0
      %772 = vmatprep.subr.bf16.mxu0 0
      %773 = vmatpush1.bf16.msra.mxu0 0
      %774 = vmatprep.subr.bf16.mxu0 0
      %775 = vmatpush1.bf16.msra.mxu0 0
      %776 = vmatprep.subr.bf16.mxu0 0
      %777 = vmatpush1.bf16.msra.mxu0 0
      %778 = vmatprep.subr.bf16.mxu0 0
      %779 = vmatpush1.bf16.msra.mxu0 %v762
      %780 = vmatprep.subr.bf16.mxu0 0
      %781 = vmatpush2.bf16.msra.mxu0 0
      %782 = vmatprep.subr.bf16.mxu0 0
      %783 = vmatpush2.bf16.msra.mxu0 0
      %784 = vmatprep.subr.bf16.mxu0 0
      %785 = vmatpush2.bf16.msra.mxu0 0
      %786 = vmatprep.subr.bf16.mxu0 0
      %787 = vmatpush2.bf16.msra.mxu0 0
      %788 = vmatprep.subr.bf16.mxu0 0
      %789 = vmatpush2.bf16.msra.mxu0 0
      %790 = vmatprep.subr.bf16.mxu0 0
      %791 = vmatpush2.bf16.msra.mxu0 0
      %792 = vmatprep.subr.bf16.mxu0 0
      %793 = vmatpush2.bf16.msra.mxu0 0
      %794 = vmatprep.subr.bf16.mxu0 0
      %795 = vmatpush2.bf16.msra.mxu0 0
      %796 = vmatprep.mubr.bf16.mxu0 0
      %797 = vmatmul.mubr.bf16.gmra.mxu0 %v752
      %v798 = vpop.f32.mrf.mxu0
      %v799 = vadd.f32 %v726, %v798
      %v800 = vpop.f32.mrf.mxu0
      %v801 = vpop.f32.mrf.mxu0
      %v802 = vadd.f32 %v729, %v801
      %v803 = vpop.f32.mrf.mxu0
      %804 = vmatprep.mubr.bf16.mxu0 0
      %805 = vmatmul.mubr.bf16.gmra.mxu0 %v755
      %v806 = vpop.f32.mrf.mxu0
      %v807 = vadd.f32 %v734, %v806
      %v808 = vpop.f32.mrf.mxu0
      %v809 = vpop.f32.mrf.mxu0
      %v810 = vadd.f32 %v737, %v809
      %v811 = vpop.f32.mrf.mxu0
      %812 = vdwg.mxu0
      %v813 = vld [vmem:[%s520] sm:$0xff]
      %v814 = vld [vmem:[%s520 + $0x8] sm:$0xff]
      %v815 = vld [vmem:[%s520 + $0x10] sm:$0xff]
      %v816 = vld [vmem:[%s520 + $0x18] sm:$0xff]
      %818 = vset.pattern.permute.xlu0 0
      %819 = vperm.xlu0 %818, %v813
      %v820 = vpop.permute.xlu0 %819
      %823 = vset.pattern.permute.xlu0 0
      %824 = vperm.xlu0 %823, %v814
      %v825 = vpop.permute.xlu0 %824
      %828 = vset.pattern.permute.xlu0 0
      %829 = vperm.xlu0 %828, %v815
      %v830 = vpop.permute.xlu0 %829
      %833 = vset.pattern.permute.xlu0 0
      %834 = vperm.xlu0 %833, %v816
      %v835 = vpop.permute.xlu0 %834
      %v837 = vadd.f32 %v799, %v820
      %v838 = vadd.f32 %v802, %v825
      %v839 = vadd.f32 %v807, %v830
      %v840 = vadd.f32 %v810, %v835
      %v841 = vld [vmem:[%s6] sm:$0xf]
      %v842 = vld [vmem:[%s6 + $0x4] sm:$0xf]
      %v843 = vpack.c.bf16 %v838, %v837
      %v844 = vpack.c.bf16 %v840, %v839
      %v845 = vld [vmem:[%s9] sm:$0xff]
      %v846 = vld [vmem:[%s9 + $0x8] sm:$0xff]
      %v847 = vld [vmem:[%s9 + $0x10] sm:$0xff]
      %v848 = vld [vmem:[%s9 + $0x18] sm:$0xff]
      %850 = vset.pattern.permute.xlu0 0
      %851 = vperm.xlu0 %850, %v845
      %v852 = vpop.permute.xlu0 %851
      %855 = vset.pattern.permute.xlu0 0
      %856 = vperm.xlu0 %855, %v846
      %v857 = vpop.permute.xlu0 %856
      %860 = vset.pattern.permute.xlu0 0
      %861 = vperm.xlu0 %860, %v847
      %v862 = vpop.permute.xlu0 %861
      %865 = vset.pattern.permute.xlu0 0
      %866 = vperm.xlu0 %865, %v848
      %v867 = vpop.permute.xlu0 %866
      %v871 = vunpack.c.l.b16 %v841
      %v872 = vunpack.c.l.b16 %v842
      %v873 = vpack.c.b16 %v872, %v871
      %v876 = vsel %vm620, %v843, 0
      %v879 = vsel %vm620, %v844, 0
      %881 = vmatprep.subr.bf16.mxu0 0
      %882 = vmatpush1.bf16.msra.mxu0 0
      %883 = vmatprep.subr.bf16.mxu0 0
      %884 = vmatpush1.bf16.msra.mxu0 0
      %885 = vmatprep.subr.bf16.mxu0 0
      %886 = vmatpush1.bf16.msra.mxu0 0
      %887 = vmatprep.subr.bf16.mxu0 0
      %888 = vmatpush1.bf16.msra.mxu0 0
      %889 = vmatprep.subr.bf16.mxu0 0
      %890 = vmatpush1.bf16.msra.mxu0 0
      %891 = vmatprep.subr.bf16.mxu0 0
      %892 = vmatpush1.bf16.msra.mxu0 0
      %893 = vmatprep.subr.bf16.mxu0 0
      %894 = vmatpush1.bf16.msra.mxu0 0
      %895 = vmatprep.subr.bf16.mxu0 0
      %896 = vmatpush1.bf16.msra.mxu0 %v873
      %897 = vmatprep.subr.bf16.mxu0 0
      %898 = vmatpush2.bf16.msra.mxu0 0
      %899 = vmatprep.subr.bf16.mxu0 0
      %900 = vmatpush2.bf16.msra.mxu0 0
      %901 = vmatprep.subr.bf16.mxu0 0
      %902 = vmatpush2.bf16.msra.mxu0 0
      %903 = vmatprep.subr.bf16.mxu0 0
      %904 = vmatpush2.bf16.msra.mxu0 0
      %905 = vmatprep.subr.bf16.mxu0 0
      %906 = vmatpush2.bf16.msra.mxu0 0
      %907 = vmatprep.subr.bf16.mxu0 0
      %908 = vmatpush2.bf16.msra.mxu0 0
      %909 = vmatprep.subr.bf16.mxu0 0
      %910 = vmatpush2.bf16.msra.mxu0 0
      %911 = vmatprep.subr.bf16.mxu0 0
      %912 = vmatpush2.bf16.msra.mxu0 0
      %913 = vmatprep.mubr.bf16.mxu0 0
      %914 = vmatmul.mubr.bf16.gmra.mxu0 %v876
      %v915 = vpop.f32.mrf.mxu0
      %v916 = vadd.f32 %v852, %v915
      %v917 = vpop.f32.mrf.mxu0
      %v918 = vpop.f32.mrf.mxu0
      %v919 = vadd.f32 %v857, %v918
      %v920 = vpop.f32.mrf.mxu0
      %921 = vmatprep.mubr.bf16.mxu0 0
      %922 = vmatmul.mubr.bf16.gmra.mxu0 %v879
      %v923 = vpop.f32.mrf.mxu0
      %v924 = vadd.f32 %v862, %v923
      %v925 = vpop.f32.mrf.mxu0
      %v926 = vpop.f32.mrf.mxu0
      %v927 = vadd.f32 %v867, %v926
      %v928 = vpop.f32.mrf.mxu0
      %929 = vdwg.mxu0
      %v930 = vmax.f32 %v916, 0.0
      %v931 = vmax.f32 %v919, 0.0
      %v932 = vmax.f32 %v924, 0.0
      %v933 = vmax.f32 %v927, 0.0
      %v934 = vld [vmem:[%s10] sm:$0xf]
      %v935 = vld [vmem:[%s10 + $0x4] sm:$0xf]
      %v936 = vld [vmem:[%s10 + $0x8] sm:$0xf]
      %v937 = vld [vmem:[%s10 + $0xc] sm:$0xf]
      %v938 = vpack.c.bf16 %v931, %v930
      %v939 = vpack.c.bf16 %v933, %v932
      %v944 = vunpack.c.l.b16 %v934
      %v945 = vunpack.c.l.b16 %v935
      %v946 = vunpack.c.l.b16 %v936
      %v947 = vunpack.c.l.b16 %v937
      %v948 = vpack.c.b16 %v945, %v944
      %v949 = vpack.c.b16 %v947, %v946
      %vm950 = vcmask 261120
      %v952 = vsel %vm950, %v948, 0
      %v955 = vsel %vm950, %v949, 0
      %957 = vmatprep.subr.bf16.mxu0 0
      %958 = vmatpush1.bf16.msra.mxu0 0
      %959 = vmatprep.subr.bf16.mxu0 0
      %960 = vmatpush1.bf16.msra.mxu0 0
      %961 = vmatprep.subr.bf16.mxu0 0
      %962 = vmatpush1.bf16.msra.mxu0 0
      %963 = vmatprep.subr.bf16.mxu0 0
      %964 = vmatpush1.bf16.msra.mxu0 0
      %965 = vmatprep.subr.bf16.mxu0 0
      %966 = vmatpush1.bf16.msra.mxu0 0
      %967 = vmatprep.subr.bf16.mxu0 0
      %968 = vmatpush1.bf16.msra.mxu0 0
      %969 = vmatprep.subr.bf16.mxu0 0
      %970 = vmatpush1.bf16.msra.mxu0 %v939
      %971 = vmatprep.subr.bf16.mxu0 0
      %972 = vmatpush1.bf16.msra.mxu0 %v938
      %973 = vmatprep.subr.bf16.mxu0 0
      %974 = vmatpush2.bf16.msra.mxu0 0
      %975 = vmatprep.subr.bf16.mxu0 0
      %976 = vmatpush2.bf16.msra.mxu0 0
      %977 = vmatprep.subr.bf16.mxu0 0
      %978 = vmatpush2.bf16.msra.mxu0 0
      %979 = vmatprep.subr.bf16.mxu0 0
      %980 = vmatpush2.bf16.msra.mxu0 0
      %981 = vmatprep.subr.bf16.mxu0 0
      %982 = vmatpush2.bf16.msra.mxu0 0
      %983 = vmatprep.subr.bf16.mxu0 0
      %984 = vmatpush2.bf16.msra.mxu0 0
      %985 = vmatprep.subr.bf16.mxu0 0
      %986 = vmatpush2.bf16.msra.mxu0 0
      %987 = vmatprep.subr.bf16.mxu0 0
      %988 = vmatpush2.bf16.msra.mxu0 0
      %989 = vmatprep.mubr.bf16.mxu0 0
      %990 = vmatmul.mubr.bf16.gmra.mxu0 %v952
      %v991 = vpop.f32.mrf.mxu0
      %v992 = vadd.f32 0.0, %v991
      %v993 = vpop.f32.mrf.mxu0
      %v994 = vpop.f32.mrf.mxu0
      %v995 = vadd.f32 0.0, %v994
      %v996 = vpop.f32.mrf.mxu0
      %997 = vmatprep.mubr.bf16.mxu0 0
      %998 = vmatmul.mubr.bf16.gmra.mxu0 %v955
      %v999 = vpop.f32.mrf.mxu0
      %v1000 = vadd.f32 0.0, %v999
      %v1001 = vpop.f32.mrf.mxu0
      %v1002 = vpop.f32.mrf.mxu0
      %v1003 = vadd.f32 0.0, %v1002
      %v1004 = vpop.f32.mrf.mxu0
      %1005 = vdwg.mxu0
      %v1006 = vpack.c.bf16 %v995, %v992
      %v1007 = vpack.c.bf16 %v1003, %v1000
      %v1008 = vld [vmem:[%s11] sm:$0xff]
      %v1009 = vld [vmem:[%s11 + $0x8] sm:$0xff]
      %v1010 = vld [vmem:[%s11 + $0x10] sm:$0xff]
      %v1011 = vld [vmem:[%s11 + $0x18] sm:$0xff]
      %1013 = vset.pattern.permute.xlu0 0
      %1014 = vperm.xlu0 %1013, %v1008
      %v1015 = vpop.permute.xlu0 %1014
      %1018 = vset.pattern.permute.xlu0 0
      %1019 = vperm.xlu0 %1018, %v1009
      %v1020 = vpop.permute.xlu0 %1019
      %1023 = vset.pattern.permute.xlu0 0
      %1024 = vperm.xlu0 %1023, %v1010
      %v1025 = vpop.permute.xlu0 %1024
      %1028 = vset.pattern.permute.xlu0 0
      %1029 = vperm.xlu0 %1028, %v1011
      %v1030 = vpop.permute.xlu0 %1029
      %v1033 = vsel %vm620, %v1006, 0
      %v1036 = vsel %vm620, %v1007, 0
      %1038 = vmatprep.subr.bf16.mxu0 0
      %1039 = vmatpush1.bf16.msra.mxu0 0
      %1040 = vmatprep.subr.bf16.mxu0 0
      %1041 = vmatpush1.bf16.msra.mxu0 0
      %1042 = vmatprep.subr.bf16.mxu0 0
      %1043 = vmatpush1.bf16.msra.mxu0 0
      %1044 = vmatprep.subr.bf16.mxu0 0
      %1045 = vmatpush1.bf16.msra.mxu0 0
      %1046 = vmatprep.subr.bf16.mxu0 0
      %1047 = vmatpush1.bf16.msra.mxu0 0
      %1048 = vmatprep.subr.bf16.mxu0 0
      %1049 = vmatpush1.bf16.msra.mxu0 0
      %1050 = vmatprep.subr.bf16.mxu0 0
      %1051 = vmatpush1.bf16.msra.mxu0 0
      %1052 = vmatprep.subr.bf16.mxu0 0
      %1053 = vmatpush1.bf16.msra.mxu0 %v873
      %1054 = vmatprep.subr.bf16.mxu0 0
      %1055 = vmatpush2.bf16.msra.mxu0 0
      %1056 = vmatprep.subr.bf16.mxu0 0
      %1057 = vmatpush2.bf16.msra.mxu0 0
      %1058 = vmatprep.subr.bf16.mxu0 0
      %1059 = vmatpush2.bf16.msra.mxu0 0
      %1060 = vmatprep.subr.bf16.mxu0 0
      %1061 = vmatpush2.bf16.msra.mxu0 0
      %1062 = vmatprep.subr.bf16.mxu0 0
      %1063 = vmatpush2.bf16.msra.mxu0 0
      %1064 = vmatprep.subr.bf16.mxu0 0
      %1065 = vmatpush2.bf16.msra.mxu0 0
      %1066 = vmatprep.subr.bf16.mxu0 0
      %1067 = vmatpush2.bf16.msra.mxu0 0
      %1068 = vmatprep.subr.bf16.mxu0 0
      %1069 = vmatpush2.bf16.msra.mxu0 0
      %1070 = vmatprep.mubr.bf16.mxu0 0
      %1071 = vmatmul.mubr.bf16.gmra.mxu0 %v1033
      %v1072 = vpop.f32.mrf.mxu0
      %v1073 = vadd.f32 %v1015, %v1072
      %v1074 = vpop.f32.mrf.mxu0
      %v1075 = vpop.f32.mrf.mxu0
      %v1076 = vadd.f32 %v1020, %v1075
      %v1077 = vpop.f32.mrf.mxu0
      %1078 = vmatprep.mubr.bf16.mxu0 0
      %1079 = vmatmul.mubr.bf16.gmra.mxu0 %v1036
      %v1080 = vpop.f32.mrf.mxu0
      %v1081 = vadd.f32 %v1025, %v1080
      %v1082 = vpop.f32.mrf.mxu0
      %v1083 = vpop.f32.mrf.mxu0
      %v1084 = vadd.f32 %v1030, %v1083
      %v1085 = vpop.f32.mrf.mxu0
      %1086 = vdwg.mxu0
      %v1087 = vmax.f32 %v1073, 0.0
      %v1088 = vmax.f32 %v1076, 0.0
      %v1089 = vmax.f32 %v1081, 0.0
      %v1090 = vmax.f32 %v1084, 0.0
      %s1091 = scalar_lea.vmem %s10, 16
      %v1092 = vld [vmem:[%s1091] sm:$0xf]
      %v1093 = vld [vmem:[%s1091 + $0x4] sm:$0xf]
      %v1094 = vld [vmem:[%s1091 + $0x8] sm:$0xf]
      %v1095 = vld [vmem:[%s1091 + $0xc] sm:$0xf]
      %v1096 = vpack.c.bf16 %v1088, %v1087
      %v1097 = vpack.c.bf16 %v1090, %v1089
      %v1102 = vunpack.c.l.b16 %v1092
      %v1103 = vunpack.c.l.b16 %v1093
      %v1104 = vunpack.c.l.b16 %v1094
      %v1105 = vunpack.c.l.b16 %v1095
      %v1106 = vpack.c.b16 %v1103, %v1102
      %v1107 = vpack.c.b16 %v1105, %v1104
      %v1109 = vsel %vm950, %v1106, 0
      %v1112 = vsel %vm950, %v1107, 0
      %1114 = vmatprep.subr.bf16.mxu0 0
      %1115 = vmatpush1.bf16.msra.mxu0 0
      %1116 = vmatprep.subr.bf16.mxu0 0
      %1117 = vmatpush1.bf16.msra.mxu0 0
      %1118 = vmatprep.subr.bf16.mxu0 0
      %1119 = vmatpush1.bf16.msra.mxu0 0
      %1120 = vmatprep.subr.bf16.mxu0 0
      %1121 = vmatpush1.bf16.msra.mxu0 0
      %1122 = vmatprep.subr.bf16.mxu0 0
      %1123 = vmatpush1.bf16.msra.mxu0 0
      %1124 = vmatprep.subr.bf16.mxu0 0
      %1125 = vmatpush1.bf16.msra.mxu0 0
      %1126 = vmatprep.subr.bf16.mxu0 0
      %1127 = vmatpush1.bf16.msra.mxu0 %v1097
      %1128 = vmatprep.subr.bf16.mxu0 0
      %1129 = vmatpush1.bf16.msra.mxu0 %v1096
      %1130 = vmatprep.subr.bf16.mxu0 0
      %1131 = vmatpush2.bf16.msra.mxu0 0
      %1132 = vmatprep.subr.bf16.mxu0 0
      %1133 = vmatpush2.bf16.msra.mxu0 0
      %1134 = vmatprep.subr.bf16.mxu0 0
      %1135 = vmatpush2.bf16.msra.mxu0 0
      %1136 = vmatprep.subr.bf16.mxu0 0
      %1137 = vmatpush2.bf16.msra.mxu0 0
      %1138 = vmatprep.subr.bf16.mxu0 0
      %1139 = vmatpush2.bf16.msra.mxu0 0
      %1140 = vmatprep.subr.bf16.mxu0 0
      %1141 = vmatpush2.bf16.msra.mxu0 0
      %1142 = vmatprep.subr.bf16.mxu0 0
      %1143 = vmatpush2.bf16.msra.mxu0 0
      %1144 = vmatprep.subr.bf16.mxu0 0
      %1145 = vmatpush2.bf16.msra.mxu0 0
      %1146 = vmatprep.mubr.bf16.mxu0 0
      %1147 = vmatmul.mubr.bf16.gmra.mxu0 %v1109
      %v1148 = vpop.f32.mrf.mxu0
      %v1149 = vadd.f32 0.0, %v1148
      %v1150 = vpop.f32.mrf.mxu0
      %v1151 = vpop.f32.mrf.mxu0
      %v1152 = vadd.f32 0.0, %v1151
      %v1153 = vpop.f32.mrf.mxu0
      %1154 = vmatprep.mubr.bf16.mxu0 0
      %1155 = vmatmul.mubr.bf16.gmra.mxu0 %v1112
      %v1156 = vpop.f32.mrf.mxu0
      %v1157 = vadd.f32 0.0, %v1156
      %v1158 = vpop.f32.mrf.mxu0
      %v1159 = vpop.f32.mrf.mxu0
      %v1160 = vadd.f32 0.0, %v1159
      %v1161 = vpop.f32.mrf.mxu0
      %1162 = vdwg.mxu0
      %v1163 = vpack.c.bf16 %v1152, %v1149
      %v1164 = vpack.c.bf16 %v1160, %v1157
      %s1165 = scalar_lea.vmem %s11, 32
      %v1166 = vld [vmem:[%s1165] sm:$0xff]
      %v1167 = vld [vmem:[%s1165 + $0x8] sm:$0xff]
      %v1168 = vld [vmem:[%s1165 + $0x10] sm:$0xff]
      %v1169 = vld [vmem:[%s1165 + $0x18] sm:$0xff]
      %1171 = vset.pattern.permute.xlu0 0
      %1172 = vperm.xlu0 %1171, %v1166
      %v1173 = vpop.permute.xlu0 %1172
      %1176 = vset.pattern.permute.xlu0 0
      %1177 = vperm.xlu0 %1176, %v1167
      %v1178 = vpop.permute.xlu0 %1177
      %1181 = vset.pattern.permute.xlu0 0
      %1182 = vperm.xlu0 %1181, %v1168
      %v1183 = vpop.permute.xlu0 %1182
      %1186 = vset.pattern.permute.xlu0 0
      %1187 = vperm.xlu0 %1186, %v1169
      %v1188 = vpop.permute.xlu0 %1187
      %v1191 = vsel %vm620, %v1163, 0
      %v1194 = vsel %vm620, %v1164, 0
      %1196 = vmatprep.subr.bf16.mxu0 0
      %1197 = vmatpush1.bf16.msra.mxu0 0
      %1198 = vmatprep.subr.bf16.mxu0 0
      %1199 = vmatpush1.bf16.msra.mxu0 0
      %1200 = vmatprep.subr.bf16.mxu0 0
      %1201 = vmatpush1.bf16.msra.mxu0 0
      %1202 = vmatprep.subr.bf16.mxu0 0
      %1203 = vmatpush1.bf16.msra.mxu0 0
      %1204 = vmatprep.subr.bf16.mxu0 0
      %1205 = vmatpush1.bf16.msra.mxu0 0
      %1206 = vmatprep.subr.bf16.mxu0 0
      %1207 = vmatpush1.bf16.msra.mxu0 0
      %1208 = vmatprep.subr.bf16.mxu0 0
      %1209 = vmatpush1.bf16.msra.mxu0 0
      %1210 = vmatprep.subr.bf16.mxu0 0
      %1211 = vmatpush1.bf16.msra.mxu0 %v873
      %1212 = vmatprep.subr.bf16.mxu0 0
      %1213 = vmatpush2.bf16.msra.mxu0 0
      %1214 = vmatprep.subr.bf16.mxu0 0
      %1215 = vmatpush2.bf16.msra.mxu0 0
      %1216 = vmatprep.subr.bf16.mxu0 0
      %1217 = vmatpush2.bf16.msra.mxu0 0
      %1218 = vmatprep.subr.bf16.mxu0 0
      %1219 = vmatpush2.bf16.msra.mxu0 0
      %1220 = vmatprep.subr.bf16.mxu0 0
      %1221 = vmatpush2.bf16.msra.mxu0 0
      %1222 = vmatprep.subr.bf16.mxu0 0
      %1223 = vmatpush2.bf16.msra.mxu0 0
      %1224 = vmatprep.subr.bf16.mxu0 0
      %1225 = vmatpush2.bf16.msra.mxu0 0
      %1226 = vmatprep.subr.bf16.mxu0 0
      %1227 = vmatpush2.bf16.msra.mxu0 0
      %1228 = vmatprep.mubr.bf16.mxu0 0
      %1229 = vmatmul.mubr.bf16.gmra.mxu0 %v1191
      %v1230 = vpop.f32.mrf.mxu0
      %v1231 = vadd.f32 %v1173, %v1230
      %v1232 = vpop.f32.mrf.mxu0
      %v1233 = vpop.f32.mrf.mxu0
      %v1234 = vadd.f32 %v1178, %v1233
      %v1235 = vpop.f32.mrf.mxu0
      %1236 = vmatprep.mubr.bf16.mxu0 0
      %1237 = vmatmul.mubr.bf16.gmra.mxu0 %v1194
      %v1238 = vpop.f32.mrf.mxu0
      %v1239 = vadd.f32 %v1183, %v1238
      %v1240 = vpop.f32.mrf.mxu0
      %v1241 = vpop.f32.mrf.mxu0
      %v1242 = vadd.f32 %v1188, %v1241
      %v1243 = vpop.f32.mrf.mxu0
      %1244 = vdwg.mxu0
      %v1245 = vmax.f32 %v1231, 0.0
      %v1246 = vmax.f32 %v1234, 0.0
      %v1247 = vmax.f32 %v1239, 0.0
      %v1248 = vmax.f32 %v1242, 0.0
      %v1249 = vld [vmem:[%s12] sm:$0x3]
      %v1250 = vpack.c.bf16 %v1246, %v1245
      %v1251 = vpack.c.bf16 %v1248, %v1247
      %v1253 = vsel %vm950, %v1249, 0
      %1255 = vmatprep.subr.bf16.mxu0 0
      %1256 = vmatpush1.bf16.msra.mxu0 0
      %1257 = vmatprep.subr.bf16.mxu0 0
      %1258 = vmatpush1.bf16.msra.mxu0 0
      %1259 = vmatprep.subr.bf16.mxu0 0
      %1260 = vmatpush1.bf16.msra.mxu0 0
      %1261 = vmatprep.subr.bf16.mxu0 0
      %1262 = vmatpush1.bf16.msra.mxu0 0
      %1263 = vmatprep.subr.bf16.mxu0 0
      %1264 = vmatpush1.bf16.msra.mxu0 0
      %1265 = vmatprep.subr.bf16.mxu0 0
      %1266 = vmatpush1.bf16.msra.mxu0 0
      %1267 = vmatprep.subr.bf16.mxu0 0
      %1268 = vmatpush1.bf16.msra.mxu0 %v1251
      %1269 = vmatprep.subr.bf16.mxu0 0
      %1270 = vmatpush1.bf16.msra.mxu0 %v1250
      %1271 = vmatprep.subr.bf16.mxu0 0
      %1272 = vmatpush2.bf16.msra.mxu0 0
      %1273 = vmatprep.subr.bf16.mxu0 0
      %1274 = vmatpush2.bf16.msra.mxu0 0
      %1275 = vmatprep.subr.bf16.mxu0 0
      %1276 = vmatpush2.bf16.msra.mxu0 0
      %1277 = vmatprep.subr.bf16.mxu0 0
      %1278 = vmatpush2.bf16.msra.mxu0 0
      %1279 = vmatprep.subr.bf16.mxu0 0
      %1280 = vmatpush2.bf16.msra.mxu0 0
      %1281 = vmatprep.subr.bf16.mxu0 0
      %1282 = vmatpush2.bf16.msra.mxu0 0
      %1283 = vmatprep.subr.bf16.mxu0 0
      %1284 = vmatpush2.bf16.msra.mxu0 0
      %1285 = vmatprep.subr.bf16.mxu0 0
      %1286 = vmatpush2.bf16.msra.mxu0 0
      %1287 = vmatprep.mubr.bf16.mxu0 0
      %1288 = vmatmul.mubr.bf16.gmra.mxu0 %v1253
      %v1289 = vpop.f32.mrf.mxu0
      %v1290 = vadd.f32 0.0, %v1289
      %v1291 = vpop.f32.mrf.mxu0
      %v1292 = vpop.f32.mrf.mxu0
      %v1293 = vpop.f32.mrf.mxu0
      %1294 = vdwg.mxu0
      %v1295 = vld [vmem:[%s4] sm:$0xf]
      %v1296 = vld [vmem:[%s4 + $0x4] sm:$0xf]
      %v1297 = vpack.c.bf16 %v1290, %v1290
      %v1300 = vunpack.c.l.b16 %v1295
      %v1301 = vunpack.c.l.b16 %v1296
      %v1302 = vpack.c.b16 %v1301, %v1300
      %v1305 = vsel %vm620, %v1297, 0
      %1307 = vmatprep.subr.bf16.mxu0 0
      %1308 = vmatpush1.bf16.msra.mxu0 0
      %1309 = vmatprep.subr.bf16.mxu0 0
      %1310 = vmatpush1.bf16.msra.mxu0 0
      %1311 = vmatprep.subr.bf16.mxu0 0
      %1312 = vmatpush1.bf16.msra.mxu0 0
      %1313 = vmatprep.subr.bf16.mxu0 0
      %1314 = vmatpush1.bf16.msra.mxu0 0
      %1315 = vmatprep.subr.bf16.mxu0 0
      %1316 = vmatpush1.bf16.msra.mxu0 0
      %1317 = vmatprep.subr.bf16.mxu0 0
      %1318 = vmatpush1.bf16.msra.mxu0 0
      %1319 = vmatprep.subr.bf16.mxu0 0
      %1320 = vmatpush1.bf16.msra.mxu0 0
      %1321 = vmatprep.subr.bf16.mxu0 0
      %1322 = vmatpush1.bf16.msra.mxu0 %v1302
      %1323 = vmatprep.subr.bf16.mxu0 0
      %1324 = vmatpush2.bf16.msra.mxu0 0
      %1325 = vmatprep.subr.bf16.mxu0 0
      %1326 = vmatpush2.bf16.msra.mxu0 0
      %1327 = vmatprep.subr.bf16.mxu0 0
      %1328 = vmatpush2.bf16.msra.mxu0 0
      %1329 = vmatprep.subr.bf16.mxu0 0
      %1330 = vmatpush2.bf16.msra.mxu0 0
      %1331 = vmatprep.subr.bf16.mxu0 0
      %1332 = vmatpush2.bf16.msra.mxu0 0
      %1333 = vmatprep.subr.bf16.mxu0 0
      %1334 = vmatpush2.bf16.msra.mxu0 0
      %1335 = vmatprep.subr.bf16.mxu0 0
      %1336 = vmatpush2.bf16.msra.mxu0 0
      %1337 = vmatprep.subr.bf16.mxu0 0
      %1338 = vmatpush2.bf16.msra.mxu0 0
      %1339 = vmatprep.mubr.bf16.mxu0 0
      %1340 = vmatmul.mubr.bf16.gmra.mxu0 %v1305
      %v1341 = vpop.f32.mrf.mxu0
      %v1342 = vadd.f32 0.0, %v1341
      %v1343 = vpop.f32.mrf.mxu0
      %v1344 = vpop.f32.mrf.mxu0
      %v1345 = vpop.f32.mrf.mxu0
      %1346 = vdwg.mxu0
      %v1347 = vsel %vm620, %v1245, 0.0
      %1348 = vadd.xlane.f32.xlu0 %v1347
      %v1349 = vpop.xlane.xlu0 %1348
      %v1350 = vsel %vm620, %v1246, 0.0
      %1351 = vadd.xlane.f32.xlu0 %v1350
      %v1352 = vpop.xlane.xlu0 %1351
      %v1353 = vsel %vm620, %v1247, 0.0
      %1354 = vadd.xlane.f32.xlu0 %v1353
      %v1355 = vpop.xlane.xlu0 %1354
      %v1356 = vsel %vm620, %v1248, 0.0
      %1357 = vadd.xlane.f32.xlu0 %v1356
      %v1358 = vpop.xlane.xlu0 %1357
      %v1359 = vmul.f32 %v1349, 0.0625
      %v1360 = vmul.f32 %v1352, 0.0625
      %v1361 = vmul.f32 %v1355, 0.0625
      %v1362 = vmul.f32 %v1358, 0.0625
      %v1363 = vld [vmem:[%s13] sm:$0x3]
      %v1364 = vpack.c.bf16 %v1360, %v1359
      %v1365 = vpack.c.bf16 %v1362, %v1361
      %v1366 = vld [vmem:[%s14] sm:$0x7]
      %v1368 = vsel %vm950, %v1363, 0
      %1370 = vmatprep.subr.bf16.mxu0 0
      %1371 = vmatpush1.bf16.msra.mxu0 0
      %1372 = vmatprep.subr.bf16.mxu0 0
      %1373 = vmatpush1.bf16.msra.mxu0 0
      %1374 = vmatprep.subr.bf16.mxu0 0
      %1375 = vmatpush1.bf16.msra.mxu0 0
      %1376 = vmatprep.subr.bf16.mxu0 0
      %1377 = vmatpush1.bf16.msra.mxu0 0
      %1378 = vmatprep.subr.bf16.mxu0 0
      %1379 = vmatpush1.bf16.msra.mxu0 0
      %1380 = vmatprep.subr.bf16.mxu0 0
      %1381 = vmatpush1.bf16.msra.mxu0 0
      %1382 = vmatprep.subr.bf16.mxu0 0
      %1383 = vmatpush1.bf16.msra.mxu0 %v1365
      %1384 = vmatprep.subr.bf16.mxu0 0
      %1385 = vmatpush1.bf16.msra.mxu0 %v1364
      %1386 = vmatprep.subr.bf16.mxu0 0
      %1387 = vmatpush2.bf16.msra.mxu0 0
      %1388 = vmatprep.subr.bf16.mxu0 0
      %1389 = vmatpush2.bf16.msra.mxu0 0
      %1390 = vmatprep.subr.bf16.mxu0 0
      %1391 = vmatpush2.bf16.msra.mxu0 0
      %1392 = vmatprep.subr.bf16.mxu0 0
      %1393 = vmatpush2.bf16.msra.mxu0 0
      %1394 = vmatprep.subr.bf16.mxu0 0
      %1395 = vmatpush2.bf16.msra.mxu0 0
      %1396 = vmatprep.subr.bf16.mxu0 0
      %1397 = vmatpush2.bf16.msra.mxu0 0
      %1398 = vmatprep.subr.bf16.mxu0 0
      %1399 = vmatpush2.bf16.msra.mxu0 0
      %1400 = vmatprep.subr.bf16.mxu0 0
      %1401 = vmatpush2.bf16.msra.mxu0 0
      %1402 = vmatprep.mubr.bf16.mxu0 0
      %1403 = vmatmul.mubr.bf16.gmra.mxu0 %v1368
      %v1404 = vpop.f32.mrf.mxu0
      %v1405 = vadd.f32 %v1366, %v1404
      %v1406 = vpop.f32.mrf.mxu0
      %v1407 = vpop.f32.mrf.mxu0
      %v1408 = vpop.f32.mrf.mxu0
      %1409 = vdwg.mxu0
      %vm1410 = vcmask 518144
      %1411 = vst.msk [vmem:[%s529] sm:$0x7] %vm1410, %v1342
      %1413 = vrot.lane.b32.xlu0 %v1405, 64
      %v1414 = vpop.permute.xlu0 %1413
      %vm1416 = vcmask 526848
      %1417 = vst.msk [vmem:[%s529] sm:$0x7] %vm1416, %v1414
      %p1418 = scmp.lt.s32.totalorder %s26, 1
      %s1419 = scalar_select %p1418, %s26, 1
      %s1420 = smul.addr %s1419, 4
      %s1421 = scalar_lea.vmem %s15, %s1420
      // Predicated region
      $region81: #{cmr_forward.3} parent=79 // pred_check
        %p1422 = pneg %p374
      $region82: #{cmr_forward.3} parent=79 // pred_check_branch
        %1424 = sbr.rel (%p1422) target = $region84
      $region83: #{cmr_forward.3} parent=79 // pred_region
        _
      $region84: #{cmr_forward.3} parent=79 // pred_fallthru
        _
    $region80: #{cmr_forward.3} parent=5 // pred_fallthru
      _
    %p1425 = scmp.le.s32.totalorder 2, %s21
    // Predicated region
    $region85: #{cmr_forward.3} parent=5 // pred_check
      %p1426 = pneg %p1425
    $region86: #{cmr_forward.3} parent=5 // pred_check_branch
      %1428 = sbr.rel (%p1426) target = $region88
    $region87: #{cmr_forward.3} parent=5 // pred_region
      %s1429 = ssub.s32 %s21, 2
      // Predicated region
      $region89: #{cmr_forward.3} parent=87 // pred_check
        %p1430 = pneg %p380
      $region90: #{cmr_forward.3} parent=87 // pred_check_branch
        %1432 = sbr.rel (%p1430) target = $region92
      $region91: #{cmr_forward.3} parent=87 // pred_region
        %p1433 = scmp.lt.s32.totalorder %s27, 1
        %s1434 = scalar_select %p1433, %s27, 1
        %s1435 = smul.addr %s1434, 4
        %s1436 = scalar_lea.vmem %s15, %s1435
      $region92: #{cmr_forward.3} parent=87 // pred_fallthru
        _
    $region88: #{cmr_forward.3} parent=5 // pred_fallthru
      _
  $region6: #{cmr_forward.3} parent=0 // loop_footer
    %s25 = sadd.s32 1, %s21
  $region7: #{cmr_forward.3} parent=0 // loop_footer_branch
    %20 = sbr.rel target = $region3
  $region8: #{cmr_forward.3} parent=0 // loop_exit
    _

</llo_original>
